<compile_context>
chip_gen: v7x
topology: tpu7x:2x2x1
jax: 0.10.0
libtpu: 0.0.40
codegen_flags: <defaults>
</compile_context>

<pallas_src>
import functools

import jax
import jax.numpy as jnp
from jax import lax
from jax.experimental import pallas as pl
from jax.experimental.pallas import tpu as pltpu


def _nonlocal_kernel(x_ref, wt_ref, wgw_ref, o_ref, theta_scr, gw_scr, *,
                     inter_channels, tq):
    # x_ref     : (1, C, HW)   one batch element, channel-first (HW on lanes)
    # wt_ref    : (Cint, C)    theta 1x1-conv weight (bf16)
    # wgw_ref   : (C, C)       folded W_w @ W_g 1x1-conv weight (bf16)
    # o_ref     : (1, C, Tq)   output tile for the current query tile
    # theta_scr : (Cint, HW)   f32 scratch: theta for every pixel (keys+queries)
    # gw_scr    : (C, HW)      bf16 scratch: folded "value" matrix (W_w W_g) x
    j = pl.program_id(1)

    # Per-batch precompute on the first query tile; scratch persists across the
    # ("arbitrary") query-tile axis, so it is reused by the remaining tiles.
    @pl.when(j == 0)
    def _():
        x_bf = x_ref[0].astype(jnp.bfloat16)                          # (C, HW)
        theta_scr[...] = jnp.dot(wt_ref[...], x_bf,
                                 preferred_element_type=jnp.float32)  # (Cint, HW)
        gw_scr[...] = jnp.dot(wgw_ref[...], x_bf,
                              preferred_element_type=jnp.float32
                              ).astype(jnp.bfloat16)                  # (C, HW)

    q0 = pl.multiple_of(j * tq, tq)

    # Query-side theta for this tile, centered over the inter-channel dim
    # (count_cov_second) and pre-scaled by 1/Cint (cheap: Cint x Tq elements).
    th_q = theta_scr[:, pl.ds(q0, tq)]                                # (Cint, Tq)
    mean_q = jnp.mean(th_q, axis=0, keepdims=True)                    # (1, Tq)
    thc = (th_q - mean_q) * (1.0 / inter_channels)                    # (Cint, Tq)

    # Scores with keys on sublanes, queries on lanes:
    #   s[n, m] = sum_d theta[d, n] * (theta[d, q0+m] - mean_{q0+m}) / Cint
    # (kept in f32: contraction dim is only Cint, so MXU cost is negligible and
    #  the softmax input stays accurate).
    s = lax.dot_general(theta_scr[...], thc, (((0,), (0,)), ((), ())),
                        preferred_element_type=jnp.float32)           # (HW, Tq)

    # Max-stabilized softmax over keys (axis 0); normalization deferred.
    m = jnp.max(s, axis=0, keepdims=True)                             # (1, Tq)
    e = jnp.exp(s - m)                                                # (HW, Tq) f32
    denom = jnp.sum(e, axis=0, keepdims=True)                         # (1, Tq)

    # Un-normalized aggregation with the folded value matrix (bf16 MXU, f32 acc),
    # output already lane-dense (C rows, Tq lanes).
    y = jnp.dot(gw_scr[...], e.astype(jnp.bfloat16),
                preferred_element_type=jnp.float32)                   # (C, Tq)

    inv = pl.reciprocal(denom, approx=True)                           # (1, Tq)
    x_q = x_ref[0, :, pl.ds(q0, tq)]                                  # (C, Tq)
    o_ref[0] = (x_q + y * inv).astype(o_ref.dtype)


def _pick_query_tile(hw, max_tq=256):
    """Largest query tile that keeps the output block TPU-tileable."""
    if hw <= max_tq:
        return hw
    for t in range(max_tq, 127, -128):        # multiples of 128 that divide HW
        if t % 128 == 0 and hw % t == 0:
            return t
    # TODO(synk): pad HW (masked tail tile) when H*W has no multiple-of-128
    # divisor; until then fall back to a single monolithic query tile.
    return hw


def nonlocal_block_2d(x, w_g, w_theta, w_w):
    """x: (B, C, H, W); w_g/w_theta: (Cint, C, 1, 1); w_w: (C, Cint, 1, 1)."""
    B, C, H, W = x.shape
    HW = H * W
    Cint = w_g.shape[0]
    tq = _pick_query_tile(HW)
    num_q = HW // tq

    # Channel-first view: no HBM transpose, HW on the lane axis.
    x_cf = x.reshape(B, C, HW)
    # Fold the output 1x1 conv into g:  w_gw = W_w @ W_g  has shape (C, C).
    wt = w_theta.reshape(Cint, C).astype(jnp.bfloat16)
    w_gw = jnp.dot(w_w.reshape(C, Cint), w_g.reshape(Cint, C),
                   preferred_element_type=jnp.float32).astype(jnp.bfloat16)

    cost = pl.CostEstimate(
        flops=int(2 * B * HW * (Cint + C) * (C + HW)),
        transcendentals=int(B * HW * HW + B * HW),
        bytes_accessed=int(2 * B * C * HW * 4 + (Cint * C + C * C) * 2),
    )

    kernel = functools.partial(_nonlocal_kernel, inter_channels=Cint, tq=tq)
    z_cf = pl.pallas_call(
        kernel,
        out_shape=jax.ShapeDtypeStruct((B, C, HW), x.dtype),
        grid_spec=pltpu.PrefetchScalarGridSpec(
            num_scalar_prefetch=0,
            grid=(B, num_q),
            in_specs=[
                pl.BlockSpec((1, C, HW), lambda b, j: (b, 0, 0)),
                pl.BlockSpec((Cint, C), lambda b, j: (0, 0)),
                pl.BlockSpec((C, C), lambda b, j: (0, 0)),
            ],
            out_specs=pl.BlockSpec((1, C, tq), lambda b, j: (b, 0, j)),
            scratch_shapes=[
                pltpu.VMEM((Cint, HW), jnp.float32),    # theta (all pixels)
                pltpu.VMEM((C, HW), jnp.bfloat16),      # folded value matrix
            ],
        ),
        compiler_params=pltpu.CompilerParams(
            dimension_semantics=("parallel", "arbitrary"),
            vmem_limit_bytes=64 * 1024 * 1024,
        ),
        cost_estimate=cost,
    )(x_cf, wt, w_gw)

    return z_cf.reshape(B, C, H, W)


def _reference(x, w_g, w_theta, w_w):
    """Pure-JAX (f32) mirror of NONLocalBlock2D.forward for verification."""
    B, C, H, W = x.shape
    HW = H * W
    Cint = w_g.shape[0]
    x_flat = x.reshape(B, C, HW)
    g_x = jnp.einsum('oc,bcm->bmo', w_g.reshape(Cint, C), x_flat)        # (B, HW, Cint)
    theta = jnp.einsum('oc,bcm->bmo', w_theta.reshape(Cint, C), x_flat)  # (B, HW, Cint)
    mean = theta.mean(axis=2, keepdims=True)
    f = jnp.einsum('bmd,bnd->bmn', theta - mean, theta) / Cint           # (B, HW, HW)
    p = jax.nn.softmax(f, axis=-1)
    y = jnp.einsum('bmn,bnd->bmd', p, g_x)                               # (B, HW, Cint)
    y = jnp.transpose(y, (0, 2, 1)).reshape(B, Cint, H, W)
    w_y = jnp.einsum('od,bdhw->bohw', w_w.reshape(C, Cint), y)
    return w_y + x


if __name__ == "__main__":
    B, C, H, W = 2, 32, 16, 32          # HW = 512 -> two query tiles of 256
    reduction = 16
    Cint = C // reduction               # inter_channels = 2 (module default)

    key = jax.random.PRNGKey(0)
    k1, k2, k3, k4 = jax.random.split(key, 4)
    x = jax.random.normal(k1, (B, C, H, W), jnp.float32)
    w_g = jax.random.normal(k2, (Cint, C, 1, 1), jnp.float32) * 0.25
    w_theta = jax.random.normal(k3, (Cint, C, 1, 1), jnp.float32) * 0.25
    # NOTE: the PyTorch __init__ sets W's weight to 0 (so z == x). We use
    # nonzero deterministic weights to exercise the full compute path; set
    # w_w = jnp.zeros_like(w_w) to reproduce the module's literal init.
    w_w = jax.random.normal(k4, (C, Cint, 1, 1), jnp.float32) * 0.25

    z = nonlocal_block_2d(x, w_g, w_theta, w_w)
    z = jax.block_until_ready(z)

    z_ref = _reference(x, w_g, w_theta, w_w)
    assert z.shape == x.shape and z.dtype == x.dtype
    # Tolerance accounts for bf16 MXU operands (f32 accumulation) in the kernel.
    assert jnp.allclose(z, z_ref, atol=2e-2, rtol=2e-2), float(
        jnp.max(jnp.abs(z - z_ref)))
    print("KERNEL_OK")
</pallas_src>

<mosaic_0001>
module attributes {stable_mosaic.version = 11 : i64} {
  func.func @_nonlocal_kernel(%arg0: i32, %arg1: i32, %arg2: memref<1x32x512xf32, #tpu.memory_space<vmem>>, %arg3: memref<2x32xbf16, #tpu.memory_space<vmem>>, %arg4: memref<32x32xbf16, #tpu.memory_space<vmem>>, %arg5: memref<1x32x256xf32, #tpu.memory_space<vmem>>, %arg6: memref<2x512xf32, #tpu.memory_space<vmem>>, %arg7: memref<32x512xbf16, #tpu.memory_space<vmem>>) attributes {dimension_semantics = [#tpu.dimension_semantics<parallel>, #tpu.dimension_semantics<arbitrary>], iteration_bounds = array<i64: 2, 2>, scalar_prefetch = 0 : i64, scratch_operands = 2 : i64, tpu.core_type = #tpu.core_type<tc>, window_params = [{transform_indices = @transform_0, window_bounds = array<i64: 1, 32, 512>}, {pipeline_mode = #tpu.pipeline_mode<synchronous>, transform_indices = @transform_1, window_bounds = array<i64: 2, 32>}, {pipeline_mode = #tpu.pipeline_mode<synchronous>, transform_indices = @transform_2, window_bounds = array<i64: 32, 32>}, {transform_indices = @transform_3, window_bounds = array<i64: 1, 32, 256>}]} {
    %c0_i32 = arith.constant 0 : i32
    %0 = arith.cmpi eq, %arg1, %c0_i32 : i32
    %1 = arith.extui %0 : i1 to i32
    %c0_i32_0 = arith.constant 0 : i32
    %2 = arith.cmpi ne, %1, %c0_i32_0 : i32
    scf.if %2 {
      %c0_16 = arith.constant 0 : index
      %c0_17 = arith.constant 0 : index
      %c0_18 = arith.constant 0 : index
      %37 = vector.load %arg2[%c0_16, %c0_17, %c0_18] : memref<1x32x512xf32, #tpu.memory_space<vmem>>, vector<1x32x512xf32>
      %38 = vector.shape_cast %37 : vector<1x32x512xf32> to vector<32x512xf32>
      %39 = arith.truncf %38 : vector<32x512xf32> to vector<32x512xbf16>
      %c0_19 = arith.constant 0 : index
      %c0_20 = arith.constant 0 : index
      %40 = vector.load %arg3[%c0_19, %c0_20] : memref<2x32xbf16, #tpu.memory_space<vmem>>, vector<2x32xbf16>
      %cst_21 = arith.constant dense<0.000000e+00> : vector<2x512xf32>
      %41 = tpu.matmul %40, %39, %cst_21 {dimension_numbers = #tpu.dot_dimension_numbers<[1], [0], [0], [1], [0, 0, 1, 1], [], []>} : vector<2x32xbf16>, vector<32x512xbf16>, vector<2x512xf32> -> vector<2x512xf32>
      %c0_22 = arith.constant 0 : index
      %c0_23 = arith.constant 0 : index
      %42 = vector.load %arg6[%c0_22, %c0_23] : memref<2x512xf32, #tpu.memory_space<vmem>>, vector<2x512xf32>
      tpu.vector_store %arg6[%c0_22, %c0_23], %41 {strides = array<i32>} : memref<2x512xf32, #tpu.memory_space<vmem>>, vector<2x512xf32>,
      %c0_24 = arith.constant 0 : index
      %c0_25 = arith.constant 0 : index
      %43 = vector.load %arg4[%c0_24, %c0_25] : memref<32x32xbf16, #tpu.memory_space<vmem>>, vector<32x32xbf16>
      %cst_26 = arith.constant dense<0.000000e+00> : vector<32x512xf32>
      %44 = tpu.matmul %43, %39, %cst_26 {dimension_numbers = #tpu.dot_dimension_numbers<[1], [0], [0], [1], [0, 0, 1, 1], [], []>} : vector<32x32xbf16>, vector<32x512xbf16>, vector<32x512xf32> -> vector<32x512xf32>
      %45 = arith.truncf %44 : vector<32x512xf32> to vector<32x512xbf16>
      %c0_27 = arith.constant 0 : index
      %c0_28 = arith.constant 0 : index
      %46 = vector.load %arg7[%c0_27, %c0_28] : memref<32x512xbf16, #tpu.memory_space<vmem>>, vector<32x512xbf16>
      tpu.vector_store %arg7[%c0_27, %c0_28], %45 {strides = array<i32>} : memref<32x512xbf16, #tpu.memory_space<vmem>>, vector<32x512xbf16>,
    } else {
    }
    %c256_i32 = arith.constant 256 : i32
    %3 = arith.muli %arg1, %c256_i32 : i32
    %4 = tpu.assume_multiple %3, 256 : i32
    %c0 = arith.constant 0 : index
    %5 = arith.index_cast %4 : i32 to index
    %6 = vector.load %arg6[%c0, %5] : memref<2x512xf32, #tpu.memory_space<vmem>>, vector<2x256xf32>
    %cst = arith.constant dense<0.000000e+00> : vector<256xf32>
    %7 = vector.multi_reduction <add>, %6, %cst [0] : vector<2x256xf32> to vector<256xf32>
    %8 = vector.shape_cast %7 : vector<256xf32> to vector<1x256xf32>
    %cst_1 = arith.constant 2.000000e+00 : f32
    %9 = vector.broadcast %cst_1 : f32 to vector<1x256xf32>
    %10 = arith.divf %8, %9 : vector<1x256xf32>
    %11 = vector.broadcast %10 : vector<1x256xf32> to vector<2x256xf32>
    %12 = arith.subf %6, %11 : vector<2x256xf32>
    %cst_2 = arith.constant 5.000000e-01 : f32
    %13 = vector.broadcast %cst_2 : f32 to vector<2x256xf32>
    %14 = arith.mulf %12, %13 : vector<2x256xf32>
    %c0_3 = arith.constant 0 : index
    %c0_4 = arith.constant 0 : index
    %15 = vector.load %arg6[%c0_3, %c0_4] : memref<2x512xf32, #tpu.memory_space<vmem>>, vector<2x512xf32>
    %cst_5 = arith.constant dense<0.000000e+00> : vector<512x256xf32>
    %16 = tpu.matmul %15, %14, %cst_5 {dimension_numbers = #tpu.dot_dimension_numbers<[0], [0], [1], [1], [0, 1, 1, 1], [], []>} : vector<2x512xf32>, vector<2x256xf32>, vector<512x256xf32> -> vector<512x256xf32>
    %cst_6 = arith.constant dense<0xFF800000> : vector<256xf32>
    %17 = vector.multi_reduction <maximumf>, %16, %cst_6 [0] : vector<512x256xf32> to vector<256xf32>
    %18 = vector.shape_cast %17 : vector<256xf32> to vector<1x256xf32>
    %19 = vector.broadcast %18 : vector<1x256xf32> to vector<512x256xf32>
    %20 = arith.subf %16, %19 : vector<512x256xf32>
    %21 = math.exp %20 : vector<512x256xf32>
    %cst_7 = arith.constant dense<0.000000e+00> : vector<256xf32>
    %22 = vector.multi_reduction <add>, %21, %cst_7 [0] : vector<512x256xf32> to vector<256xf32>
    %23 = vector.shape_cast %22 : vector<256xf32> to vector<1x256xf32>
    %c0_8 = arith.constant 0 : index
    %c0_9 = arith.constant 0 : index
    %24 = vector.load %arg7[%c0_8, %c0_9] : memref<32x512xbf16, #tpu.memory_space<vmem>>, vector<32x512xbf16>
    %25 = arith.truncf %21 : vector<512x256xf32> to vector<512x256xbf16>
    %cst_10 = arith.constant dense<0.000000e+00> : vector<32x256xf32>
    %26 = tpu.matmul %24, %25, %cst_10 {dimension_numbers = #tpu.dot_dimension_numbers<[1], [0], [0], [1], [0, 0, 1, 1], [], []>} : vector<32x512xbf16>, vector<512x256xbf16>, vector<32x256xf32> -> vector<32x256xf32>
    %27 = tpu.reciprocal %23 {approx = true} : vector<1x256xf32> -> vector<1x256xf32>
    %c0_11 = arith.constant 0 : index
    %c0_12 = arith.constant 0 : index
    %28 = arith.index_cast %4 : i32 to index
    %29 = vector.load %arg2[%c0_11, %c0_12, %28] : memref<1x32x512xf32, #tpu.memory_space<vmem>>, vector<1x32x256xf32>
    %30 = vector.shape_cast %29 : vector<1x32x256xf32> to vector<32x256xf32>
    %31 = vector.broadcast %27 : vector<1x256xf32> to vector<32x256xf32>
    %32 = arith.mulf %26, %31 : vector<32x256xf32>
    %33 = arith.addf %30, %32 : vector<32x256xf32>
    %c0_13 = arith.constant 0 : index
    %c0_14 = arith.constant 0 : index
    %c0_15 = arith.constant 0 : index
    %34 = vector.load %arg5[%c0_13, %c0_14, %c0_15] : memref<1x32x256xf32, #tpu.memory_space<vmem>>, vector<1x32x256xf32>
    %35 = vector.shape_cast %34 : vector<1x32x256xf32> to vector<32x256xf32>
    %36 = vector.shape_cast %33 : vector<32x256xf32> to vector<1x32x256xf32>
    tpu.vector_store %arg5[%c0_13, %c0_14, %c0_15], %36 {strides = array<i32>} : memref<1x32x256xf32, #tpu.memory_space<vmem>>, vector<1x32x256xf32>,
    return
  }
  func.func @transform_0(%arg0: i32, %arg1: i32) -> (i32, i32, i32) {
    %c0_i32 = arith.constant 0 : i32
    %c0_i32_0 = arith.constant 0 : i32
    %c0_i32_1 = arith.constant 0 : i32
    return %arg0, %c0_i32, %c0_i32_0 : i32, i32, i32
  }
  func.func @transform_1(%arg0: i32, %arg1: i32) -> (i32, i32) {
    %c0_i32 = arith.constant 0 : i32
    %c0_i32_0 = arith.constant 0 : i32
    %c0_i32_1 = arith.constant 0 : i32
    return %c0_i32, %c0_i32_0 : i32, i32
  }
  func.func @transform_2(%arg0: i32, %arg1: i32) -> (i32, i32) {
    %c0_i32 = arith.constant 0 : i32
    %c0_i32_0 = arith.constant 0 : i32
    %c0_i32_1 = arith.constant 0 : i32
    return %c0_i32, %c0_i32_0 : i32, i32
  }
  func.func @transform_3(%arg0: i32, %arg1: i32) -> (i32, i32, i32) {
    %c0_i32 = arith.constant 0 : i32
    %c0_i32_0 = arith.constant 0 : i32
    return %arg0, %c0_i32, %arg1 : i32, i32, i32
  }
}

</mosaic_0001>

<llo_original>
// kernel: tpu_custom_call.1
$region0: #{tpu_custom_call.1}
  #allocation0 [shape = 'u32[]', space=smem, size = 0x4, offset = 0x4, fixed_abs, tag = 'smem constant byte address 0x4 - core index']
  #allocation1 [shape = 'u32[144,128]{1,0:T(1,128)}', space=vmem, size = 0x12000, scoped, tag = 'internal scratch']
  #allocation2 [shape = 'f32[2,512]{1,0:T(2,128)}', space=vmem, size = 0x1000, scoped, tag = 'scratch operand']
  #allocation3 [shape = 'bf16[32,512]{1,0:T(16,128)(2,1)}', space=vmem, size = 0x8000, scoped, tag = 'scratch operand']
  %s0 = inlined_call_operand.hbm [shape: f32[2,32,512], index: 0, kind: input, shape index: {}]
  %s1 = inlined_call_operand.hbm [shape: bf16[2,32], index: 1, kind: input, shape index: {}]
  %s2 = inlined_call_operand.hbm [shape: bf16[32,32], index: 2, kind: input, shape index: {}]
  %s3 = inlined_call_operand.hbm [shape: f32[2,32,512], index: 3, kind: output, shape index: {}]
  %s4 = sld [smem:[#allocation0]]
  $region61: #{tpu_custom_call.1} parent=0
    _
  %s6 = ssub.s32 1, %s4
  %s7 = scalar_select 0, %s6, %s4
  $region1: #{tpu_custom_call.1} parent=0
    #allocation4 [shape = 'u8[131072]{0}', space=vmem, size = 0x20000, scoped, tag = 'input window, operand 0']
    #allocation5 [shape = 's32[2]{0}', space=sflag, size = 0x8, scoped, tag = 'scoped memory for tpu_custom_call.1']
    #allocation6 [shape = 's32[2]{0}', space=sflag, size = 0x8, scoped, tag = 'scoped memory for tpu_custom_call.1']
    #allocation7 [shape = 'u8[512]{0}', space=vmem, size = 0x400, scoped, tag = 'input window, operand 1, single buffered']
    #allocation8 [shape = 's32[1]{0}', space=sflag, size = 0x4, scoped, tag = 'scoped memory for tpu_custom_call.1']
    #allocation9 [shape = 'u8[8192]{0}', space=vmem, size = 0x2000, scoped, tag = 'input window, operand 2, single buffered']
    #allocation10 [shape = 'u8[65536]{0}', space=vmem, size = 0x10000, scoped, tag = 'output window, operand 0']
    %8 = vsyncpa [#allocation5], 0
    %s9 = scalar_lea.sflag [#allocation5], 1
    %10 = vsyncpa %s9, 0
    %11 = vsyncpa [#allocation8], 0
    %12 = vsyncpa [#allocation6], 0
    %s13 = scalar_lea.sflag [#allocation6], 1
    %14 = vsyncpa %s13, 0
    loop: start=0, step=1, limit=6
    $region2: #{tpu_custom_call.1} parent=1 // loop_pre_header
      _
    $region3: #{tpu_custom_call.1} parent=1 // loop_header
      %s16 = sphi 0, %s20
      %p17 = scmp.ge.s32.totalorder %s16, 6
      %s23 = sphi 0, %s35
      %s24 = sphi 0, %s31
      %s25 = sphi 0, %s23
      %s26 = sphi 0, %s24
      %s27 = sphi 0, %s25
      %s28 = sphi 0, %s26
      %s38 = sphi 0, %s40
      %s41 = sphi 0, %s38
      %s42 = sphi 0, %s41
      %s58 = sphi 0, %s42
      %s62 = sphi 0, %s62
      %s64 = sphi 0, %s62
      %s65 = sphi 0, %s64
      %s79 = sphi 0, %s65
      %s83 = sphi 0, %s83
      %s85 = sphi 0, %s83
      %s86 = sphi 0, %s85
      %s100 = sphi 0, %s86
      %s108 = sphi 0, %s110
      %s111 = sphi 0, %s108
      %s112 = sphi 0, %s111
      %s128 = sphi 0, %s112
    $region4: #{tpu_custom_call.1} parent=1 // loop_header_branch
      %19 = sbr.rel (%p17) target = $region8
    $region5: #{tpu_custom_call.1} parent=1 // loop_body
      %s21 = ssub.s32 %s16, 1
      %s22 = ssub.s32 %s16, 2
      %s29 = sadd.s32 1, %s24
      %p30 = scmp.ge.s32.totalorder %s29, 2
      %s31 = scalar_select %p30, 0, %s29
      %s32 = sadd.s32 1, %s23
      %s33 = scalar_select %p30, %s32, %s23
      %p34 = scmp.ge.s32.totalorder %s33, 2
      %s35 = scalar_select %p34, 0, %s33
      %s36 = ssub.s32 %s23, %s35
      %p37 = scmp.eq.s32.totalorder %s36, 0
      %s39 = sadd.s32 %s38, 1
      %s40 = scalar_select %p37, %s38, %s39
      %p43 = pneg %p37
      %p44 = scmp.eq.s32.totalorder %s16, 3
      %p45 = por %p43, %p44
      %p46 = scmp.ne.s32.totalorder %s38, %s41
      %p47 = scmp.eq.s32.totalorder %s16, 0
      %p48 = por %p46, %p47
      %p49 = scmp.ne.s32.totalorder %s38, %s41
      %p50 = scmp.eq.s32.totalorder %s21, 3
      %p51 = por %p49, %p50
      %p52 = scmp.ne.s32.totalorder %s41, %s42
      %p53 = scmp.eq.s32.totalorder %s21, 0
      %p54 = por %p52, %p53
      %p55 = scmp.ne.s32.totalorder %s41, %s42
      %p56 = scmp.eq.s32.totalorder %s22, 3
      %p57 = por %p55, %p56
      %p59 = scmp.ne.s32.totalorder %s42, %s58
      %p60 = scmp.eq.s32.totalorder %s22, 0
      %p61 = por %p59, %p60
      %s63 = sadd.s32 %s62, 1
      %p66 = scmp.eq.s32.totalorder %s16, 3
      %p67 = scmp.ne.s32.totalorder %s62, %s64
      %p68 = scmp.eq.s32.totalorder %s16, 0
      %p69 = por %p67, %p68
      %p70 = scmp.ne.s32.totalorder %s62, %s64
      %p71 = scmp.eq.s32.totalorder %s21, 3
      %p72 = por %p70, %p71
      %p73 = scmp.ne.s32.totalorder %s64, %s65
      %p74 = scmp.eq.s32.totalorder %s21, 0
      %p75 = por %p73, %p74
      %p76 = scmp.ne.s32.totalorder %s64, %s65
      %p77 = scmp.eq.s32.totalorder %s22, 3
      %p78 = por %p76, %p77
      %p80 = scmp.ne.s32.totalorder %s65, %s79
      %p81 = scmp.eq.s32.totalorder %s22, 0
      %p82 = por %p80, %p81
      %s84 = sadd.s32 %s83, 1
      %p87 = scmp.eq.s32.totalorder %s16, 3
      %p88 = scmp.ne.s32.totalorder %s83, %s85
      %p89 = scmp.eq.s32.totalorder %s16, 0
      %p90 = por %p88, %p89
      %p91 = scmp.ne.s32.totalorder %s83, %s85
      %p92 = scmp.eq.s32.totalorder %s21, 3
      %p93 = por %p91, %p92
      %p94 = scmp.ne.s32.totalorder %s85, %s86
      %p95 = scmp.eq.s32.totalorder %s21, 0
      %p96 = por %p94, %p95
      %p97 = scmp.ne.s32.totalorder %s85, %s86
      %p98 = scmp.eq.s32.totalorder %s22, 3
      %p99 = por %p97, %p98
      %p101 = scmp.ne.s32.totalorder %s86, %s100
      %p102 = scmp.eq.s32.totalorder %s22, 0
      %p103 = por %p101, %p102
      %s104 = ssub.s32 %s23, %s35
      %s105 = ssub.s32 %s24, %s31
      %s106 = sor.u32 %s104, %s105
      %p107 = scmp.eq.s32.totalorder %s106, 0
      %s109 = sadd.s32 %s108, 1
      %s110 = scalar_select %p107, %s108, %s109
      %p113 = pneg %p107
      %p114 = scmp.eq.s32.totalorder %s16, 3
      %p115 = por %p113, %p114
      %p116 = scmp.ne.s32.totalorder %s108, %s111
      %p117 = scmp.eq.s32.totalorder %s16, 0
      %p118 = por %p116, %p117
      %p119 = scmp.ne.s32.totalorder %s108, %s111
      %p120 = scmp.eq.s32.totalorder %s21, 3
      %p121 = por %p119, %p120
      %p122 = scmp.ne.s32.totalorder %s111, %s112
      %p123 = scmp.eq.s32.totalorder %s21, 0
      %p124 = por %p122, %p123
      %p125 = scmp.ne.s32.totalorder %s111, %s112
      %p126 = scmp.eq.s32.totalorder %s22, 3
      %p127 = por %p125, %p126
      %p129 = scmp.ne.s32.totalorder %s112, %s128
      %p130 = scmp.eq.s32.totalorder %s22, 0
      %p131 = por %p129, %p130
      %p132 = scmp.le.s32.totalorder 1, %s16
      %p133 = scmp.lt.s32.totalorder %s16, 5
      %p134 = pnand %p132, %p133
      %p135 = pneg %p134
      // Predicated region
      $region9: #{tpu_custom_call.1} parent=5 // pred_check
        _
      $region10: #{tpu_custom_call.1} parent=5 // pred_check_branch
        %137 = sbr.rel (%p134) target = $region12
      $region11: #{tpu_custom_call.1} parent=5 // pred_region
        %s138 = ssub.s32 %s16, 1
        // Predicated region
        $region13: #{tpu_custom_call.1} parent=11 // pred_check
          %p139 = pneg %p75
        $region14: #{tpu_custom_call.1} parent=11 // pred_check_branch
          %141 = sbr.rel (%p139) target = $region16
        $region15: #{tpu_custom_call.1} parent=11 // pred_region
          %s143 = ssub.s32 16, 16
          %144 = vsyncadd [#allocation8], %s143
          %s146 = sshll.u32 [#allocation7], 4
          %s147 = int_to_ptr.vmem [resolvable:$true] %s146
          %149 = dma.hbm_to_vmem [thread:$0]  %s1, 16, %s147, [#allocation8]
        $region16: #{tpu_custom_call.1} parent=11 // pred_fallthru
          _
        // Predicated region
        $region17: #{tpu_custom_call.1} parent=11 // pred_check
          %p150 = pneg %p96
        $region18: #{tpu_custom_call.1} parent=11 // pred_check_branch
          %152 = sbr.rel (%p150) target = $region20
        $region19: #{tpu_custom_call.1} parent=11 // pred_region
          %s154 = ssub.s32 256, 256
          %155 = vsyncadd [#allocation8], %s154
          %s156 = sshll.u32 [#allocation9], 4
          %s157 = int_to_ptr.vmem [resolvable:$true] %s156
          %162 = dma.hbm_to_vmem [thread:$0]  %s2, 256, %s157, [#allocation8], 64, 64, 4
        $region20: #{tpu_custom_call.1} parent=11 // pred_fallthru
          _
      $region12: #{tpu_custom_call.1} parent=5 // pred_fallthru
        _
      %p163 = scmp.lt.s32.totalorder %s16, 4
      // Predicated region
      $region21: #{tpu_custom_call.1} parent=5 // pred_check
        %p164 = pneg %p163
      $region22: #{tpu_custom_call.1} parent=5 // pred_check_branch
        %166 = sbr.rel (%p164) target = $region24
      $region23: #{tpu_custom_call.1} parent=5 // pred_region
        // Predicated region
        $region25: #{tpu_custom_call.1} parent=23 // pred_check
          %p167 = pneg %p48
        $region26: #{tpu_custom_call.1} parent=23 // pred_check_branch
          %169 = sbr.rel (%p167) target = $region28
        $region27: #{tpu_custom_call.1} parent=23 // pred_region
          %s170 = sand.u32 %s38, 1
          %s171 = scalar_lea.sflag [#allocation5], %s170
          %s172 = sand.u32 %s38, 1
          %s173 = smul.addr %s172, 128
          %s174 = scalar_lea.vmem [#allocation4], %s173
          %s176 = ssub.s32 2048, 2048
          %177 = vsyncadd %s171, %s176
          %s178 = smul.addr %s23, 16
          %s179 = smul.addr %s178, 128
          %s180 = scalar_lea.hbm %s0, %s179
          %s181 = sshll.u32 %s174, 4
          %s182 = int_to_ptr.vmem [resolvable:$true] %s181
          %187 = dma.hbm_to_vmem [thread:$0]  %s180, 2048, %s182, %s171, 512, 512, 32
        $region28: #{tpu_custom_call.1} parent=23 // pred_fallthru
          _
      $region24: #{tpu_custom_call.1} parent=5 // pred_fallthru
        _
      %p188 = scmp.le.s32.totalorder 1, %s16
      %p189 = scmp.lt.s32.totalorder %s16, 5
      %p190 = pnand %p188, %p189
      %p191 = pneg %p190
      // Predicated region
      $region29: #{tpu_custom_call.1} parent=5 // pred_check
        _
      $region30: #{tpu_custom_call.1} parent=5 // pred_check_branch
        %193 = sbr.rel (%p190) target = $region32
      $region31: #{tpu_custom_call.1} parent=5 // pred_region
        %s194 = ssub.s32 %s16, 1
        %s195 = sand.u32 %s41, 1
        %s196 = scalar_lea.sflag [#allocation5], %s195
        %s197 = sand.u32 %s41, 1
        %s198 = smul.addr %s197, 128
        %s199 = scalar_lea.vmem [#allocation4], %s198
        // Predicated region
        $region33: #{tpu_custom_call.1} parent=31 // pred_check
          %p200 = pneg %p54
        $region34: #{tpu_custom_call.1} parent=31 // pred_check_branch
          %202 = sbr.rel (%p200) target = $region36
        $region35: #{tpu_custom_call.1} parent=31 // pred_region
          %203 = dma.done %s196, 2048
        $region36: #{tpu_custom_call.1} parent=31 // pred_fallthru
          _
        // Predicated region
        $region37: #{tpu_custom_call.1} parent=31 // pred_check
          %p204 = pneg %p75
        $region38: #{tpu_custom_call.1} parent=31 // pred_check_branch
          %206 = sbr.rel (%p204) target = $region40
        $region39: #{tpu_custom_call.1} parent=31 // pred_region
          %207 = dma.done [#allocation8], 16
        $region40: #{tpu_custom_call.1} parent=31 // pred_fallthru
          _
        // Predicated region
        $region41: #{tpu_custom_call.1} parent=31 // pred_check
          %p208 = pneg %p96
        $region42: #{tpu_custom_call.1} parent=31 // pred_check_branch
          %210 = sbr.rel (%p208) target = $region44
        $region43: #{tpu_custom_call.1} parent=31 // pred_region
          %211 = dma.done [#allocation8], 256
        $region44: #{tpu_custom_call.1} parent=31 // pred_fallthru
          _
        %s212 = sand.u32 %s41, 1
        %s213 = scalar_lea.sflag [#allocation5], %s212
        %s214 = sand.u32 %s41, 1
        %s215 = smul.addr %s214, 128
        %s216 = scalar_lea.vmem [#allocation4], %s215
        %p217 = pneg %p54
        %p218 = pneg %p51
        %p219 = pneg %p75
        %p220 = pneg %p72
        %p221 = pneg %p96
        %p222 = pneg %p93
        %p223 = pneg %p124
        %p224 = pneg %p121
        %s225 = sand.u32 %s111, 1
        %s226 = scalar_lea.sflag [#allocation6], %s225
        %s227 = sand.u32 %s111, 1
        %s228 = smul.addr %s227, 64
        %s229 = scalar_lea.vmem [#allocation10], %s228
        %s230 = smul.u32 2, %s26
        %p232 = scmp.eq.s32.totalorder %s26, 0
        // Predicated region
        $region45: #{tpu_custom_call.1} parent=31 // pred_check
          %p233 = pneg %p232
        $region46: #{tpu_custom_call.1} parent=31 // pred_check_branch
          %235 = sbr.rel (%p233) target = $region48
        $region47: #{tpu_custom_call.1} parent=31 // pred_region
          %v236 = vld [vmem:[%s199] sm:$0xff]
          %v237 = vld [vmem:[%s199 + $0x8] sm:$0xff]
          %v238 = vld [vmem:[%s199 + $0x10] sm:$0xff]
          %v239 = vld [vmem:[%s199 + $0x18] sm:$0xff]
          %v240 = vld [vmem:[%s199 + $0x20] sm:$0xff]
          %v241 = vld [vmem:[%s199 + $0x28] sm:$0xff]
          %v242 = vld [vmem:[%s199 + $0x30] sm:$0xff]
          %v243 = vld [vmem:[%s199 + $0x38] sm:$0xff]
          %v244 = vld [vmem:[%s199 + $0x40] sm:$0xff]
          %v245 = vld [vmem:[%s199 + $0x48] sm:$0xff]
          %v246 = vld [vmem:[%s199 + $0x50] sm:$0xff]
          %v247 = vld [vmem:[%s199 + $0x58] sm:$0xff]
          %v248 = vld [vmem:[%s199 + $0x60] sm:$0xff]
          %v249 = vld [vmem:[%s199 + $0x68] sm:$0xff]
          %v250 = vld [vmem:[%s199 + $0x70] sm:$0xff]
          %v251 = vld [vmem:[%s199 + $0x78] sm:$0xff]
          %v252 = vpack.c.bf16 %v240, %v236
          %v253 = vpack.c.bf16 %v241, %v237
          %v254 = vpack.c.bf16 %v242, %v238
          %v255 = vpack.c.bf16 %v243, %v239
          %v256 = vpack.c.bf16 %v248, %v244
          %v257 = vpack.c.bf16 %v249, %v245
          %v258 = vpack.c.bf16 %v250, %v246
          %v259 = vpack.c.bf16 %v251, %v247
          %v260 = vld [vmem:[#allocation7] sm:$0x1]
          %vm261 = vcmask 261120
          %v263 = vsel %vm261, %v260, 0
          %265 = vmatprep.subr.bf16.mxu0 %v253
          %266 = vmatpush1.bf16.msra.mxu0 %v252
          %267 = vmatprep.subr.bf16.mxu0 %v257
          %268 = vmatpush1.bf16.msra.mxu0 %v256
          %269 = vmatprep.subr.bf16.mxu0 0
          %270 = vmatpush1.bf16.msra.mxu0 0
          %271 = vmatprep.subr.bf16.mxu0 0
          %272 = vmatpush1.bf16.msra.mxu0 0
          %273 = vmatprep.subr.bf16.mxu0 0
          %274 = vmatpush1.bf16.msra.mxu0 0
          %275 = vmatprep.subr.bf16.mxu0 0
          %276 = vmatpush1.bf16.msra.mxu0 0
          %277 = vmatprep.subr.bf16.mxu0 0
          %278 = vmatpush1.bf16.msra.mxu0 0
          %279 = vmatprep.subr.bf16.mxu0 0
          %280 = vmatpush1.bf16.msra.mxu0 0
          %281 = vmatprep.subr.bf16.mxu0 0
          %282 = vmatpush1.bf16.msra.mxu0 0
          %283 = vmatprep.subr.bf16.mxu0 0
          %284 = vmatpush1.bf16.msra.mxu0 0
          %285 = vmatprep.subr.bf16.mxu0 0
          %286 = vmatpush1.bf16.msra.mxu0 0
          %287 = vmatprep.subr.bf16.mxu0 0
          %288 = vmatpush1.bf16.msra.mxu0 0
          %289 = vmatprep.subr.bf16.mxu0 0
          %290 = vmatpush1.bf16.msra.mxu0 0
          %291 = vmatprep.subr.bf16.mxu0 0
          %292 = vmatpush1.bf16.msra.mxu0 0
          %293 = vmatprep.subr.bf16.mxu0 0
          %294 = vmatpush1.bf16.msra.mxu0 0
          %295 = vmatprep.subr.bf16.mxu0 0
          %296 = vmatpush1.bf16.msra.mxu0 0
          %297 = vmatprep.mubr.bf16.mxu0 0
          %298 = vmatmul.mubr.bf16.gmra.mrb[0].mxu0 %v263
          %v299 = vpop.f32.mrb[0].mxu0
          %v300 = vadd.f32 0.0, %v299
          %v301 = vpop.f32.mrb[0].mxu0
          %v302 = vadd.f32 0.0, %v301
          %v303 = vpop.f32.mrb[0].mxu0
          %v304 = vpop.f32.mrb[0].mxu0
          %305 = vdwg.mxu0
          %306 = vmatprep.subr.bf16.mxu0 %v255
          %307 = vmatpush1.bf16.msra.mxu0 %v254
          %308 = vmatprep.subr.bf16.mxu0 %v259
          %309 = vmatpush1.bf16.msra.mxu0 %v258
          %310 = vmatprep.subr.bf16.mxu0 0
          %311 = vmatpush1.bf16.msra.mxu0 0
          %312 = vmatprep.subr.bf16.mxu0 0
          %313 = vmatpush1.bf16.msra.mxu0 0
          %314 = vmatprep.subr.bf16.mxu0 0
          %315 = vmatpush1.bf16.msra.mxu0 0
          %316 = vmatprep.subr.bf16.mxu0 0
          %317 = vmatpush1.bf16.msra.mxu0 0
          %318 = vmatprep.subr.bf16.mxu0 0
          %319 = vmatpush1.bf16.msra.mxu0 0
          %320 = vmatprep.subr.bf16.mxu0 0
          %321 = vmatpush1.bf16.msra.mxu0 0
          %322 = vmatprep.subr.bf16.mxu0 0
          %323 = vmatpush1.bf16.msra.mxu0 0
          %324 = vmatprep.subr.bf16.mxu0 0
          %325 = vmatpush1.bf16.msra.mxu0 0
          %326 = vmatprep.subr.bf16.mxu0 0
          %327 = vmatpush1.bf16.msra.mxu0 0
          %328 = vmatprep.subr.bf16.mxu0 0
          %329 = vmatpush1.bf16.msra.mxu0 0
          %330 = vmatprep.subr.bf16.mxu0 0
          %331 = vmatpush1.bf16.msra.mxu0 0
          %332 = vmatprep.subr.bf16.mxu0 0
          %333 = vmatpush1.bf16.msra.mxu0 0
          %334 = vmatprep.subr.bf16.mxu0 0
          %335 = vmatpush1.bf16.msra.mxu0 0
          %336 = vmatprep.subr.bf16.mxu0 0
          %337 = vmatpush1.bf16.msra.mxu0 0
          %338 = vmatprep.mubr.bf16.mxu0 0
          %339 = vmatmul.mubr.bf16.gmra.mrb[0].mxu0 %v263
          %v340 = vpop.f32.mrb[0].mxu0
          %v341 = vadd.f32 0.0, %v340
          %v342 = vpop.f32.mrb[0].mxu0
          %v343 = vadd.f32 0.0, %v342
          %v344 = vpop.f32.mrb[0].mxu0
          %v345 = vpop.f32.mrb[0].mxu0
          %346 = vdwg.mxu0
          %v351 = vcombine.low %v300, %v302
          %v352 = vcombine.low %v341, %v343
          %v354 = vunpack.c.l.s4 1983009808
          %v355 = vunpack.c.0.s8 %v354
          %v356 = vlaneseq
          %v357 = vshrl.u32 %v356, 7
          %v358 = vsub.s32 %v355, %v357
          %v359 = vrot.slane %v351, %v358
          %v361 = vunpack.c.l.s4 1983009808
          %v362 = vunpack.c.0.s8 %v361
          %v363 = vlaneseq
          %v364 = vshrl.u32 %v363, 7
          %v365 = vsub.s32 %v362, %v364
          %v366 = vrot.slane %v352, %v365
          %v367 = vcombine.low %v359, %v366
          %369 = vst [vmem:[#allocation2] sm:$0xff] %v367
          %v370 = vld [vmem:[#allocation9] sm:$0xf]
          %v371 = vld [vmem:[#allocation9 + $0x4] sm:$0xf]
          %v372 = vld [vmem:[#allocation9 + $0x8] sm:$0xf]
          %v373 = vld [vmem:[#allocation9 + $0xc] sm:$0xf]
          %v378 = vunpack.c.l.b16 %v370
          %v379 = vunpack.c.l.b16 %v371
          %v380 = vunpack.c.l.b16 %v372
          %v381 = vunpack.c.l.b16 %v373
          %v382 = vpack.c.b16 %v379, %v378
          %v383 = vpack.c.b16 %v381, %v380
          %v385 = vsel %vm261, %v382, 0
          %v388 = vsel %vm261, %v383, 0
          %390 = vmatprep.subr.bf16.mxu0 %v253
          %391 = vmatpush1.bf16.msra.mxu0 %v252
          %392 = vmatprep.subr.bf16.mxu0 %v257
          %393 = vmatpush1.bf16.msra.mxu0 %v256
          %394 = vmatprep.subr.bf16.mxu0 0
          %395 = vmatpush1.bf16.msra.mxu0 0
          %396 = vmatprep.subr.bf16.mxu0 0
          %397 = vmatpush1.bf16.msra.mxu0 0
          %398 = vmatprep.subr.bf16.mxu0 0
          %399 = vmatpush1.bf16.msra.mxu0 0
          %400 = vmatprep.subr.bf16.mxu0 0
          %401 = vmatpush1.bf16.msra.mxu0 0
          %402 = vmatprep.subr.bf16.mxu0 0
          %403 = vmatpush1.bf16.msra.mxu0 0
          %404 = vmatprep.subr.bf16.mxu0 0
          %405 = vmatpush1.bf16.msra.mxu0 0
          %406 = vmatprep.subr.bf16.mxu0 0
          %407 = vmatpush1.bf16.msra.mxu0 0
          %408 = vmatprep.subr.bf16.mxu0 0
          %409 = vmatpush1.bf16.msra.mxu0 0
          %410 = vmatprep.subr.bf16.mxu0 0
          %411 = vmatpush1.bf16.msra.mxu0 0
          %412 = vmatprep.subr.bf16.mxu0 0
          %413 = vmatpush1.bf16.msra.mxu0 0
          %414 = vmatprep.subr.bf16.mxu0 0
          %415 = vmatpush1.bf16.msra.mxu0 0
          %416 = vmatprep.subr.bf16.mxu0 0
          %417 = vmatpush1.bf16.msra.mxu0 0
          %418 = vmatprep.subr.bf16.mxu0 0
          %419 = vmatpush1.bf16.msra.mxu0 0
          %420 = vmatprep.subr.bf16.mxu0 0
          %421 = vmatpush1.bf16.msra.mxu0 0
          %422 = vmatprep.mubr.bf16.mxu0 0
          %423 = vmatmul.mubr.bf16.gmra.mrb[0].mxu0 %v385
          %v424 = vpop.f32.mrb[0].mxu0
          %v425 = vadd.f32 0.0, %v424
          %v426 = vpop.f32.mrb[0].mxu0
          %v427 = vadd.f32 0.0, %v426
          %v428 = vpop.f32.mrb[0].mxu0
          %v429 = vadd.f32 0.0, %v428
          %v430 = vpop.f32.mrb[0].mxu0
          %v431 = vadd.f32 0.0, %v430
          %432 = vmatprep.mubr.bf16.mxu0 0
          %433 = vmatmul.mubr.bf16.gmra.mrb[0].mxu0 %v388
          %v434 = vpop.f32.mrb[0].mxu0
          %v435 = vadd.f32 0.0, %v434
          %v436 = vpop.f32.mrb[0].mxu0
          %v437 = vadd.f32 0.0, %v436
          %v438 = vpop.f32.mrb[0].mxu0
          %v439 = vadd.f32 0.0, %v438
          %v440 = vpop.f32.mrb[0].mxu0
          %v441 = vadd.f32 0.0, %v440
          %442 = vdwg.mxu0
          %443 = vmatprep.subr.bf16.mxu0 %v255
          %444 = vmatpush1.bf16.msra.mxu0 %v254
          %445 = vmatprep.subr.bf16.mxu0 %v259
          %446 = vmatpush1.bf16.msra.mxu0 %v258
          %447 = vmatprep.subr.bf16.mxu0 0
          %448 = vmatpush1.bf16.msra.mxu0 0
          %449 = vmatprep.subr.bf16.mxu0 0
          %450 = vmatpush1.bf16.msra.mxu0 0
          %451 = vmatprep.subr.bf16.mxu0 0
          %452 = vmatpush1.bf16.msra.mxu0 0
          %453 = vmatprep.subr.bf16.mxu0 0
          %454 = vmatpush1.bf16.msra.mxu0 0
          %455 = vmatprep.subr.bf16.mxu0 0
          %456 = vmatpush1.bf16.msra.mxu0 0
          %457 = vmatprep.subr.bf16.mxu0 0
          %458 = vmatpush1.bf16.msra.mxu0 0
          %459 = vmatprep.subr.bf16.mxu0 0
          %460 = vmatpush1.bf16.msra.mxu0 0
          %461 = vmatprep.subr.bf16.mxu0 0
          %462 = vmatpush1.bf16.msra.mxu0 0
          %463 = vmatprep.subr.bf16.mxu0 0
          %464 = vmatpush1.bf16.msra.mxu0 0
          %465 = vmatprep.subr.bf16.mxu0 0
          %466 = vmatpush1.bf16.msra.mxu0 0
          %467 = vmatprep.subr.bf16.mxu0 0
          %468 = vmatpush1.bf16.msra.mxu0 0
          %469 = vmatprep.subr.bf16.mxu0 0
          %470 = vmatpush1.bf16.msra.mxu0 0
          %471 = vmatprep.subr.bf16.mxu0 0
          %472 = vmatpush1.bf16.msra.mxu0 0
          %473 = vmatprep.subr.bf16.mxu0 0
          %474 = vmatpush1.bf16.msra.mxu0 0
          %475 = vmatprep.mubr.bf16.mxu0 0
          %476 = vmatmul.mubr.bf16.gmra.mrb[0].mxu0 %v385
          %v477 = vpop.f32.mrb[0].mxu0
          %v478 = vadd.f32 0.0, %v477
          %v479 = vpop.f32.mrb[0].mxu0
          %v480 = vadd.f32 0.0, %v479
          %v481 = vpop.f32.mrb[0].mxu0
          %v482 = vadd.f32 0.0, %v481
          %v483 = vpop.f32.mrb[0].mxu0
          %v484 = vadd.f32 0.0, %v483
          %485 = vmatprep.mubr.bf16.mxu0 0
          %486 = vmatmul.mubr.bf16.gmra.mrb[0].mxu0 %v388
          %v487 = vpop.f32.mrb[0].mxu0
          %v488 = vadd.f32 0.0, %v487
          %v489 = vpop.f32.mrb[0].mxu0
          %v490 = vadd.f32 0.0, %v489
          %v491 = vpop.f32.mrb[0].mxu0
          %v492 = vadd.f32 0.0, %v491
          %v493 = vpop.f32.mrb[0].mxu0
          %v494 = vadd.f32 0.0, %v493
          %495 = vdwg.mxu0
          %v496 = vpack.c.bf16 %v429, %v425
          %v497 = vpack.c.bf16 %v431, %v427
          %v498 = vpack.c.bf16 %v482, %v478
          %v499 = vpack.c.bf16 %v484, %v480
          %v500 = vpack.c.bf16 %v439, %v435
          %v501 = vpack.c.bf16 %v441, %v437
          %v502 = vpack.c.bf16 %v492, %v488
          %v503 = vpack.c.bf16 %v494, %v490
          %504 = vst [vmem:[#allocation3] sm:$0xff] %v496
          %505 = vst [vmem:[#allocation3 + $0x8] sm:$0xff] %v497
          %506 = vst [vmem:[#allocation3 + $0x10] sm:$0xff] %v498
          %507 = vst [vmem:[#allocation3 + $0x18] sm:$0xff] %v499
          %508 = vst [vmem:[#allocation3 + $0x20] sm:$0xff] %v500
          %509 = vst [vmem:[#allocation3 + $0x28] sm:$0xff] %v501
          %510 = vst [vmem:[#allocation3 + $0x30] sm:$0xff] %v502
          %511 = vst [vmem:[#allocation3 + $0x38] sm:$0xff] %v503
        $region48: #{tpu_custom_call.1} parent=31 // pred_fallthru
          _
        %s512 = smul.u32 %s26, 256
        %s513 = sshra.s32 %s512, 7
        %s514 = sand.u32 %s512, 127
        %s515 = smul.addr %s513, 2
        %s516 = scalar_lea.vmem [#allocation2], %s515
        %v517 = vld [vmem:[%s516] sm:$0xf]
        %v520 = vunpack.c.l.s4 1983009808
        %v521 = vunpack.c.0.s8 %v520
        %v522 = vlaneseq
        %v523 = vshrl.u32 %v522, 7
        %v524 = vsub.s32 %v521, %v523
        %v525 = vrot.slane %v517, %v524
        %v526 = vcombine.high %v525, %v525
        %vm529 = vcmask 1041408
        %v530 = vsel %vm529, %v525, 0.0
        %v531 = vrot.slane %v530, 4
        %v532 = vadd.f32 %v530, %v531
        %v533 = vrot.slane %v532, 2
        %v534 = vadd.f32 %v532, %v533
        %v535 = vrot.slane %v534, 1
        %v536 = vadd.f32 %v534, %v535
        %v537 = vsel %vm529, %v526, 0.0
        %v538 = vrot.slane %v537, 4
        %v539 = vadd.f32 %v537, %v538
        %v540 = vrot.slane %v539, 2
        %v541 = vadd.f32 %v539, %v540
        %v542 = vrot.slane %v541, 1
        %v543 = vadd.f32 %v541, %v542
        %v544 = vrcp.pop 2.0
        %v545 = vmul.f32 %v536, %v544
        %v546 = vmul.f32 %v543, %v544
        %v549 = vcombine.low %v545, %v546
        %v551 = vunpack.c.l.s4 1983009808
        %v552 = vunpack.c.0.s8 %v551
        %v553 = vlaneseq
        %v554 = vshrl.u32 %v553, 7
        %v555 = vsub.s32 %v552, %v554
        %v556 = vrot.slane %v549, %v555
        %v558 = vsub.f32 %v517, %v556
        %v559 = vmul.f32 %v558, 0.5
        %v560 = vld [vmem:[#allocation2] sm:$0xff]
        %v562 = vcombine.high %v560, %v560
        %v564 = vunpack.c.l.s4 1983009808
        %v565 = vunpack.c.0.s8 %v564
        %v566 = vlaneseq
        %v567 = vshrl.u32 %v566, 7
        %v568 = vsub.s32 %v565, %v567
        %v569 = vrot.slane %v560, %v568
        %v571 = vunpack.c.l.s4 1983009808
        %v572 = vunpack.c.0.s8 %v571
        %v573 = vlaneseq
        %v574 = vshrl.u32 %v573, 7
        %v575 = vsub.s32 %v572, %v574
        %v576 = vrot.slane %v562, %v575
        %v577 = vcombine.high %v569, %v569
        %v578 = vcombine.high %v576, %v576
        %583 = vxpose.xlu0.b32.start [1/16] %v569, 128
        %584 = vxpose.xlu0.b32.cont [2/16] 0.0, 128
        %585 = vxpose.xlu0.b32.cont [3/16] 0.0, 128
        %586 = vxpose.xlu0.b32.cont [4/16] 0.0, 128
        %587 = vxpose.xlu0.b32.cont [5/16] 0.0, 128
        %588 = vxpose.xlu0.b32.cont [6/16] 0.0, 128
        %589 = vxpose.xlu0.b32.cont [7/16] 0.0, 128
        %590 = vxpose.xlu0.b32.cont [8/16] 0.0, 128
        %591 = vxpose.xlu0.b32.cont [9/16] 0.0, 128
        %592 = vxpose.xlu0.b32.cont [10/16] 0.0, 128
        %593 = vxpose.xlu0.b32.cont [11/16] 0.0, 128
        %594 = vxpose.xlu0.b32.cont [12/16] 0.0, 128
        %595 = vxpose.xlu0.b32.cont [13/16] 0.0, 128
        %596 = vxpose.xlu0.b32.cont [14/16] 0.0, 128
        %597 = vxpose.xlu0.b32.cont [15/16] 0.0, 128
        %598 = vxpose.xlu0.b32.end [16/16] 0.0, 128
        %v599 = vpop.trf.xlu0
        %v600 = vpop.trf.xlu0
        %v601 = vpop.trf.xlu0
        %v602 = vpop.trf.xlu0
        %v603 = vpop.trf.xlu0
        %v604 = vpop.trf.xlu0
        %v605 = vpop.trf.xlu0
        %v606 = vpop.trf.xlu0
        %v607 = vpop.trf.xlu0
        %v608 = vpop.trf.xlu0
        %v609 = vpop.trf.xlu0
        %v610 = vpop.trf.xlu0
        %v611 = vpop.trf.xlu0
        %v612 = vpop.trf.xlu0
        %v613 = vpop.trf.xlu0
        %v614 = vpop.trf.xlu0
        %615 = vxpose.xlu0.b32.start [1/16] %v577, 128
        %616 = vxpose.xlu0.b32.cont [2/16] 0.0, 128
        %617 = vxpose.xlu0.b32.cont [3/16] 0.0, 128
        %618 = vxpose.xlu0.b32.cont [4/16] 0.0, 128
        %619 = vxpose.xlu0.b32.cont [5/16] 0.0, 128
        %620 = vxpose.xlu0.b32.cont [6/16] 0.0, 128
        %621 = vxpose.xlu0.b32.cont [7/16] 0.0, 128
        %622 = vxpose.xlu0.b32.cont [8/16] 0.0, 128
        %623 = vxpose.xlu0.b32.cont [9/16] 0.0, 128
        %624 = vxpose.xlu0.b32.cont [10/16] 0.0, 128
        %625 = vxpose.xlu0.b32.cont [11/16] 0.0, 128
        %626 = vxpose.xlu0.b32.cont [12/16] 0.0, 128
        %627 = vxpose.xlu0.b32.cont [13/16] 0.0, 128
        %628 = vxpose.xlu0.b32.cont [14/16] 0.0, 128
        %629 = vxpose.xlu0.b32.cont [15/16] 0.0, 128
        %630 = vxpose.xlu0.b32.end [16/16] 0.0, 128
        %v631 = vpop.trf.xlu0
        %v632 = vpop.trf.xlu0
        %v633 = vpop.trf.xlu0
        %v634 = vpop.trf.xlu0
        %v635 = vpop.trf.xlu0
        %v636 = vpop.trf.xlu0
        %v637 = vpop.trf.xlu0
        %v638 = vpop.trf.xlu0
        %v639 = vpop.trf.xlu0
        %v640 = vpop.trf.xlu0
        %v641 = vpop.trf.xlu0
        %v642 = vpop.trf.xlu0
        %v643 = vpop.trf.xlu0
        %v644 = vpop.trf.xlu0
        %v645 = vpop.trf.xlu0
        %v646 = vpop.trf.xlu0
        %647 = vxpose.xlu0.b32.start [1/16] %v576, 128
        %648 = vxpose.xlu0.b32.cont [2/16] 0.0, 128
        %649 = vxpose.xlu0.b32.cont [3/16] 0.0, 128
        %650 = vxpose.xlu0.b32.cont [4/16] 0.0, 128
        %651 = vxpose.xlu0.b32.cont [5/16] 0.0, 128
        %652 = vxpose.xlu0.b32.cont [6/16] 0.0, 128
        %653 = vxpose.xlu0.b32.cont [7/16] 0.0, 128
        %654 = vxpose.xlu0.b32.cont [8/16] 0.0, 128
        %655 = vxpose.xlu0.b32.cont [9/16] 0.0, 128
        %656 = vxpose.xlu0.b32.cont [10/16] 0.0, 128
        %657 = vxpose.xlu0.b32.cont [11/16] 0.0, 128
        %658 = vxpose.xlu0.b32.cont [12/16] 0.0, 128
        %659 = vxpose.xlu0.b32.cont [13/16] 0.0, 128
        %660 = vxpose.xlu0.b32.cont [14/16] 0.0, 128
        %661 = vxpose.xlu0.b32.cont [15/16] 0.0, 128
        %662 = vxpose.xlu0.b32.end [16/16] 0.0, 128
        %v663 = vpop.trf.xlu0
        %v664 = vpop.trf.xlu0
        %v665 = vpop.trf.xlu0
        %v666 = vpop.trf.xlu0
        %v667 = vpop.trf.xlu0
        %v668 = vpop.trf.xlu0
        %v669 = vpop.trf.xlu0
        %v670 = vpop.trf.xlu0
        %v671 = vpop.trf.xlu0
        %v672 = vpop.trf.xlu0
        %v673 = vpop.trf.xlu0
        %v674 = vpop.trf.xlu0
        %v675 = vpop.trf.xlu0
        %v676 = vpop.trf.xlu0
        %v677 = vpop.trf.xlu0
        %v678 = vpop.trf.xlu0
        %679 = vxpose.xlu0.b32.start [1/16] %v578, 128
        %680 = vxpose.xlu0.b32.cont [2/16] 0.0, 128
        %681 = vxpose.xlu0.b32.cont [3/16] 0.0, 128
        %682 = vxpose.xlu0.b32.cont [4/16] 0.0, 128
        %683 = vxpose.xlu0.b32.cont [5/16] 0.0, 128
        %684 = vxpose.xlu0.b32.cont [6/16] 0.0, 128
        %685 = vxpose.xlu0.b32.cont [7/16] 0.0, 128
        %686 = vxpose.xlu0.b32.cont [8/16] 0.0, 128
        %687 = vxpose.xlu0.b32.cont [9/16] 0.0, 128
        %688 = vxpose.xlu0.b32.cont [10/16] 0.0, 128
        %689 = vxpose.xlu0.b32.cont [11/16] 0.0, 128
        %690 = vxpose.xlu0.b32.cont [12/16] 0.0, 128
        %691 = vxpose.xlu0.b32.cont [13/16] 0.0, 128
        %692 = vxpose.xlu0.b32.cont [14/16] 0.0, 128
        %693 = vxpose.xlu0.b32.cont [15/16] 0.0, 128
        %694 = vxpose.xlu0.b32.end [16/16] 0.0, 128
        %v695 = vpop.trf.xlu0
        %v696 = vpop.trf.xlu0
        %v697 = vpop.trf.xlu0
        %v698 = vpop.trf.xlu0
        %v699 = vpop.trf.xlu0
        %v700 = vpop.trf.xlu0
        %v701 = vpop.trf.xlu0
        %v702 = vpop.trf.xlu0
        %v703 = vpop.trf.xlu0
        %v704 = vpop.trf.xlu0
        %v705 = vpop.trf.xlu0
        %v706 = vpop.trf.xlu0
        %v707 = vpop.trf.xlu0
        %v708 = vpop.trf.xlu0
        %v709 = vpop.trf.xlu0
        %v710 = vpop.trf.xlu0
        %v713 = vunpack.c.l.s4 1983009808
        %v714 = vunpack.c.0.s8 %v713
        %v715 = vlaneseq
        %v716 = vshrl.u32 %v715, 7
        %v717 = vsub.s32 %v714, %v716
        %v718 = vrot.slane %v559, %v717
        %v719 = vcombine.high %v718, %v718
        %vm720 = vcmask 15360
        %v722 = vsel %vm720, %v599, 0
        %v725 = vsel %vm720, %v600, 0
        %v728 = vsel %vm720, %v601, 0
        %v731 = vsel %vm720, %v602, 0
        %v734 = vsel %vm720, %v603, 0
        %v737 = vsel %vm720, %v604, 0
        %v740 = vsel %vm720, %v605, 0
        %v743 = vsel %vm720, %v606, 0
        %v746 = vsel %vm720, %v607, 0
        %v749 = vsel %vm720, %v608, 0
        %v752 = vsel %vm720, %v609, 0
        %v755 = vsel %vm720, %v610, 0
        %v758 = vsel %vm720, %v611, 0
        %v761 = vsel %vm720, %v612, 0
        %v764 = vsel %vm720, %v613, 0
        %v767 = vsel %vm720, %v614, 0
        %v770 = vsel %vm720, %v631, 0
        %v773 = vsel %vm720, %v632, 0
        %v776 = vsel %vm720, %v633, 0
        %v779 = vsel %vm720, %v634, 0
        %v782 = vsel %vm720, %v635, 0
        %v785 = vsel %vm720, %v636, 0
        %v788 = vsel %vm720, %v637, 0
        %v791 = vsel %vm720, %v638, 0
        %v794 = vsel %vm720, %v639, 0
        %v797 = vsel %vm720, %v640, 0
        %v800 = vsel %vm720, %v641, 0
        %v803 = vsel %vm720, %v642, 0
        %v806 = vsel %vm720, %v643, 0
        %v809 = vsel %vm720, %v644, 0
        %v812 = vsel %vm720, %v645, 0
        %v815 = vsel %vm720, %v646, 0
        %v818 = vsel %vm720, %v663, 0
        %v821 = vsel %vm720, %v664, 0
        %v824 = vsel %vm720, %v665, 0
        %v827 = vsel %vm720, %v666, 0
        %v830 = vsel %vm720, %v667, 0
        %v833 = vsel %vm720, %v668, 0
        %v836 = vsel %vm720, %v669, 0
        %v839 = vsel %vm720, %v670, 0
        %v842 = vsel %vm720, %v671, 0
        %v845 = vsel %vm720, %v672, 0
        %v848 = vsel %vm720, %v673, 0
        %v851 = vsel %vm720, %v674, 0
        %v854 = vsel %vm720, %v675, 0
        %v857 = vsel %vm720, %v676, 0
        %v860 = vsel %vm720, %v677, 0
        %v863 = vsel %vm720, %v678, 0
        %v866 = vsel %vm720, %v695, 0
        %v869 = vsel %vm720, %v696, 0
        %v872 = vsel %vm720, %v697, 0
        %v875 = vsel %vm720, %v698, 0
        %v878 = vsel %vm720, %v699, 0
        %v881 = vsel %vm720, %v700, 0
        %v884 = vsel %vm720, %v701, 0
        %v887 = vsel %vm720, %v702, 0
        %v890 = vsel %vm720, %v703, 0
        %v893 = vsel %vm720, %v704, 0
        %v896 = vsel %vm720, %v705, 0
        %v899 = vsel %vm720, %v706, 0
        %v902 = vsel %vm720, %v707, 0
        %v905 = vsel %vm720, %v708, 0
        %v908 = vsel %vm720, %v709, 0
        %v911 = vsel %vm720, %v710, 0
        %v913 = vsel %vm529, %v718, 0
        %v915 = vsel %vm529, %v719, 0
        %917 = vmatprep.subr.mxu0 %v915
        %918 = vmatpush1.msra.mxu0 %v913
        %919 = vmatprep.subr.mxu0 0.0
        %920 = vmatpush1.msra.mxu0 0.0
        %921 = vmatprep.subr.mxu0 0.0
        %922 = vmatpush1.msra.mxu0 0.0
        %923 = vmatprep.subr.mxu0 0.0
        %924 = vmatpush1.msra.mxu0 0.0
        %925 = vmatprep.subr.mxu0 0.0
        %926 = vmatpush1.msra.mxu0 0.0
        %927 = vmatprep.subr.mxu0 0.0
        %928 = vmatpush1.msra.mxu0 0.0
        %929 = vmatprep.subr.mxu0 0.0
        %930 = vmatpush1.msra.mxu0 0.0
        %931 = vmatprep.subr.mxu0 0.0
        %932 = vmatpush1.msra.mxu0 0.0
        %933 = vmatprep.subr.mxu0 0.0
        %934 = vmatpush1.msra.mxu0 0.0
        %935 = vmatprep.subr.mxu0 0.0
        %936 = vmatpush1.msra.mxu0 0.0
        %937 = vmatprep.subr.mxu0 0.0
        %938 = vmatpush1.msra.mxu0 0.0
        %939 = vmatprep.subr.mxu0 0.0
        %940 = vmatpush1.msra.mxu0 0.0
        %941 = vmatprep.subr.mxu0 0.0
        %942 = vmatpush1.msra.mxu0 0.0
        %943 = vmatprep.subr.mxu0 0.0
        %944 = vmatpush1.msra.mxu0 0.0
        %945 = vmatprep.subr.mxu0 0.0
        %946 = vmatpush1.msra.mxu0 0.0
        %947 = vmatprep.subr.mxu0 0.0
        %948 = vmatpush1.msra.mxu0 0.0
        %949 = vmatprep.subr.mxu0 0.0
        %950 = vmatpush1.msra.mxu0 0.0
        %951 = vmatprep.subr.mxu0 0.0
        %952 = vmatpush1.msra.mxu0 0.0
        %953 = vmatprep.subr.mxu0 0.0
        %954 = vmatpush1.msra.mxu0 0.0
        %955 = vmatprep.subr.mxu0 0.0
        %956 = vmatpush1.msra.mxu0 0.0
        %957 = vmatprep.subr.mxu0 0.0
        %958 = vmatpush1.msra.mxu0 0.0
        %959 = vmatprep.subr.mxu0 0.0
        %960 = vmatpush1.msra.mxu0 0.0
        %961 = vmatprep.subr.mxu0 0.0
        %962 = vmatpush1.msra.mxu0 0.0
        %963 = vmatprep.subr.mxu0 0.0
        %964 = vmatpush1.msra.mxu0 0.0
        %965 = vmatprep.subr.mxu0 0.0
        %966 = vmatpush1.msra.mxu0 0.0
        %967 = vmatprep.subr.mxu0 0.0
        %968 = vmatpush1.msra.mxu0 0.0
        %969 = vmatprep.subr.mxu0 0.0
        %970 = vmatpush1.msra.mxu0 0.0
        %971 = vmatprep.subr.mxu0 0.0
        %972 = vmatpush1.msra.mxu0 0.0
        %973 = vmatprep.subr.mxu0 0.0
        %974 = vmatpush1.msra.mxu0 0.0
        %975 = vmatprep.subr.mxu0 0.0
        %976 = vmatpush1.msra.mxu0 0.0
        %977 = vmatprep.subr.mxu0 0.0
        %978 = vmatpush1.msra.mxu0 0.0
        %979 = vmatprep.subr.mxu0 0.0
        %980 = vmatpush1.msra.mxu0 0.0
        %981 = vmatprep.mubr.f32.mxu0 0.0
        %982 = vmatmul.mubr.f32.gmra.mrb[0].mxu0 %v722
        %v983 = vpop.f32.mrb[0].mxu0
        %v984 = vadd.f32 0.0, %v983
        %v985 = vpop.f32.mrb[0].mxu0
        %v986 = vadd.f32 0.0, %v985
        %987 = vmatprep.mubr.f32.mxu0 0.0
        %988 = vmatmul.mubr.f32.gmra.mrb[0].mxu0 %v725
        %v989 = vpop.f32.mrb[0].mxu0
        %v990 = vadd.f32 0.0, %v989
        %v991 = vpop.f32.mrb[0].mxu0
        %v992 = vadd.f32 0.0, %v991
        %993 = vmatprep.mubr.f32.mxu0 0.0
        %994 = vmatmul.mubr.f32.gmra.mrb[0].mxu0 %v728
        %v995 = vpop.f32.mrb[0].mxu0
        %v996 = vadd.f32 0.0, %v995
        %v997 = vpop.f32.mrb[0].mxu0
        %v998 = vadd.f32 0.0, %v997
        %999 = vmatprep.mubr.f32.mxu0 0.0
        %1000 = vmatmul.mubr.f32.gmra.mrb[0].mxu0 %v731
        %v1001 = vpop.f32.mrb[0].mxu0
        %v1002 = vadd.f32 0.0, %v1001
        %v1003 = vpop.f32.mrb[0].mxu0
        %v1004 = vadd.f32 0.0, %v1003
        %1005 = vmatprep.mubr.f32.mxu0 0.0
        %1006 = vmatmul.mubr.f32.gmra.mrb[0].mxu0 %v734
        %v1007 = vpop.f32.mrb[0].mxu0
        %v1008 = vadd.f32 0.0, %v1007
        %v1009 = vpop.f32.mrb[0].mxu0
        %v1010 = vadd.f32 0.0, %v1009
        %1011 = vmatprep.mubr.f32.mxu0 0.0
        %1012 = vmatmul.mubr.f32.gmra.mrb[0].mxu0 %v737
        %v1013 = vpop.f32.mrb[0].mxu0
        %v1014 = vadd.f32 0.0, %v1013
        %v1015 = vpop.f32.mrb[0].mxu0
        %v1016 = vadd.f32 0.0, %v1015
        %1017 = vmatprep.mubr.f32.mxu0 0.0
        %1018 = vmatmul.mubr.f32.gmra.mrb[0].mxu0 %v740
        %v1019 = vpop.f32.mrb[0].mxu0
        %v1020 = vadd.f32 0.0, %v1019
        %v1021 = vpop.f32.mrb[0].mxu0
        %v1022 = vadd.f32 0.0, %v1021
        %1023 = vmatprep.mubr.f32.mxu0 0.0
        %1024 = vmatmul.mubr.f32.gmra.mrb[0].mxu0 %v743
        %v1025 = vpop.f32.mrb[0].mxu0
        %v1026 = vadd.f32 0.0, %v1025
        %v1027 = vpop.f32.mrb[0].mxu0
        %v1028 = vadd.f32 0.0, %v1027
        %1029 = vmatprep.mubr.f32.mxu0 0.0
        %1030 = vmatmul.mubr.f32.gmra.mrb[0].mxu0 %v746
        %v1031 = vpop.f32.mrb[0].mxu0
        %v1032 = vadd.f32 0.0, %v1031
        %v1033 = vpop.f32.mrb[0].mxu0
        %v1034 = vadd.f32 0.0, %v1033
        %1035 = vmatprep.mubr.f32.mxu0 0.0
        %1036 = vmatmul.mubr.f32.gmra.mrb[0].mxu0 %v749
        %v1037 = vpop.f32.mrb[0].mxu0
        %v1038 = vadd.f32 0.0, %v1037
        %v1039 = vpop.f32.mrb[0].mxu0
        %v1040 = vadd.f32 0.0, %v1039
        %1041 = vmatprep.mubr.f32.mxu0 0.0
        %1042 = vmatmul.mubr.f32.gmra.mrb[0].mxu0 %v752
        %v1043 = vpop.f32.mrb[0].mxu0
        %v1044 = vadd.f32 0.0, %v1043
        %v1045 = vpop.f32.mrb[0].mxu0
        %v1046 = vadd.f32 0.0, %v1045
        %1047 = vmatprep.mubr.f32.mxu0 0.0
        %1048 = vmatmul.mubr.f32.gmra.mrb[0].mxu0 %v755
        %v1049 = vpop.f32.mrb[0].mxu0
        %v1050 = vadd.f32 0.0, %v1049
        %v1051 = vpop.f32.mrb[0].mxu0
        %v1052 = vadd.f32 0.0, %v1051
        %1053 = vmatprep.mubr.f32.mxu0 0.0
        %1054 = vmatmul.mubr.f32.gmra.mrb[0].mxu0 %v758
        %v1055 = vpop.f32.mrb[0].mxu0
        %v1056 = vadd.f32 0.0, %v1055
        %v1057 = vpop.f32.mrb[0].mxu0
        %v1058 = vadd.f32 0.0, %v1057
        %1059 = vmatprep.mubr.f32.mxu0 0.0
        %1060 = vmatmul.mubr.f32.gmra.mrb[0].mxu0 %v761
        %v1061 = vpop.f32.mrb[0].mxu0
        %v1062 = vadd.f32 0.0, %v1061
        %v1063 = vpop.f32.mrb[0].mxu0
        %v1064 = vadd.f32 0.0, %v1063
        %1065 = vmatprep.mubr.f32.mxu0 0.0
        %1066 = vmatmul.mubr.f32.gmra.mrb[0].mxu0 %v764
        %v1067 = vpop.f32.mrb[0].mxu0
        %v1068 = vadd.f32 0.0, %v1067
        %v1069 = vpop.f32.mrb[0].mxu0
        %v1070 = vadd.f32 0.0, %v1069
        %1071 = vmatprep.mubr.f32.mxu0 0.0
        %1072 = vmatmul.mubr.f32.gmra.mrb[0].mxu0 %v767
        %v1073 = vpop.f32.mrb[0].mxu0
        %v1074 = vadd.f32 0.0, %v1073
        %v1075 = vpop.f32.mrb[0].mxu0
        %v1076 = vadd.f32 0.0, %v1075
        %1077 = vmatprep.mubr.f32.mxu0 0.0
        %1078 = vmatmul.mubr.f32.gmra.mrb[0].mxu0 %v770
        %v1079 = vpop.f32.mrb[0].mxu0
        %v1080 = vadd.f32 0.0, %v1079
        %v1081 = vpop.f32.mrb[0].mxu0
        %v1082 = vadd.f32 0.0, %v1081
        %1083 = vmatprep.mubr.f32.mxu0 0.0
        %1084 = vmatmul.mubr.f32.gmra.mrb[0].mxu0 %v773
        %v1085 = vpop.f32.mrb[0].mxu0
        %v1086 = vadd.f32 0.0, %v1085
        %v1087 = vpop.f32.mrb[0].mxu0
        %v1088 = vadd.f32 0.0, %v1087
        %1089 = vmatprep.mubr.f32.mxu0 0.0
        %1090 = vmatmul.mubr.f32.gmra.mrb[0].mxu0 %v776
        %v1091 = vpop.f32.mrb[0].mxu0
        %v1092 = vadd.f32 0.0, %v1091
        %v1093 = vpop.f32.mrb[0].mxu0
        %v1094 = vadd.f32 0.0, %v1093
        %1095 = vmatprep.mubr.f32.mxu0 0.0
        %1096 = vmatmul.mubr.f32.gmra.mrb[0].mxu0 %v779
        %v1097 = vpop.f32.mrb[0].mxu0
        %v1098 = vadd.f32 0.0, %v1097
        %v1099 = vpop.f32.mrb[0].mxu0
        %v1100 = vadd.f32 0.0, %v1099
        %1101 = vmatprep.mubr.f32.mxu0 0.0
        %1102 = vmatmul.mubr.f32.gmra.mrb[0].mxu0 %v782
        %v1103 = vpop.f32.mrb[0].mxu0
        %v1104 = vadd.f32 0.0, %v1103
        %v1105 = vpop.f32.mrb[0].mxu0
        %v1106 = vadd.f32 0.0, %v1105
        %1107 = vmatprep.mubr.f32.mxu0 0.0
        %1108 = vmatmul.mubr.f32.gmra.mrb[0].mxu0 %v785
        %v1109 = vpop.f32.mrb[0].mxu0
        %v1110 = vadd.f32 0.0, %v1109
        %v1111 = vpop.f32.mrb[0].mxu0
        %v1112 = vadd.f32 0.0, %v1111
        %1113 = vmatprep.mubr.f32.mxu0 0.0
        %1114 = vmatmul.mubr.f32.gmra.mrb[0].mxu0 %v788
        %v1115 = vpop.f32.mrb[0].mxu0
        %v1116 = vadd.f32 0.0, %v1115
        %v1117 = vpop.f32.mrb[0].mxu0
        %v1118 = vadd.f32 0.0, %v1117
        %1119 = vmatprep.mubr.f32.mxu0 0.0
        %1120 = vmatmul.mubr.f32.gmra.mrb[0].mxu0 %v791
        %v1121 = vpop.f32.mrb[0].mxu0
        %v1122 = vadd.f32 0.0, %v1121
        %v1123 = vpop.f32.mrb[0].mxu0
        %v1124 = vadd.f32 0.0, %v1123
        %1125 = vmatprep.mubr.f32.mxu0 0.0
        %1126 = vmatmul.mubr.f32.gmra.mrb[0].mxu0 %v794
        %v1127 = vpop.f32.mrb[0].mxu0
        %v1128 = vadd.f32 0.0, %v1127
        %v1129 = vpop.f32.mrb[0].mxu0
        %v1130 = vadd.f32 0.0, %v1129
        %1131 = vmatprep.mubr.f32.mxu0 0.0
        %1132 = vmatmul.mubr.f32.gmra.mrb[0].mxu0 %v797
        %v1133 = vpop.f32.mrb[0].mxu0
        %v1134 = vadd.f32 0.0, %v1133
        %v1135 = vpop.f32.mrb[0].mxu0
        %v1136 = vadd.f32 0.0, %v1135
        %1137 = vmatprep.mubr.f32.mxu0 0.0
        %1138 = vmatmul.mubr.f32.gmra.mrb[0].mxu0 %v800
        %v1139 = vpop.f32.mrb[0].mxu0
        %v1140 = vadd.f32 0.0, %v1139
        %v1141 = vpop.f32.mrb[0].mxu0
        %v1142 = vadd.f32 0.0, %v1141
        %1143 = vmatprep.mubr.f32.mxu0 0.0
        %1144 = vmatmul.mubr.f32.gmra.mrb[0].mxu0 %v803
        %v1145 = vpop.f32.mrb[0].mxu0
        %v1146 = vadd.f32 0.0, %v1145
        %v1147 = vpop.f32.mrb[0].mxu0
        %v1148 = vadd.f32 0.0, %v1147
        %1149 = vmatprep.mubr.f32.mxu0 0.0
        %1150 = vmatmul.mubr.f32.gmra.mrb[0].mxu0 %v806
        %v1151 = vpop.f32.mrb[0].mxu0
        %v1152 = vadd.f32 0.0, %v1151
        %v1153 = vpop.f32.mrb[0].mxu0
        %v1154 = vadd.f32 0.0, %v1153
        %1155 = vmatprep.mubr.f32.mxu0 0.0
        %1156 = vmatmul.mubr.f32.gmra.mrb[0].mxu0 %v809
        %v1157 = vpop.f32.mrb[0].mxu0
        %v1158 = vadd.f32 0.0, %v1157
        %v1159 = vpop.f32.mrb[0].mxu0
        %v1160 = vadd.f32 0.0, %v1159
        %1161 = vmatprep.mubr.f32.mxu0 0.0
        %1162 = vmatmul.mubr.f32.gmra.mrb[0].mxu0 %v812
        %v1163 = vpop.f32.mrb[0].mxu0
        %v1164 = vadd.f32 0.0, %v1163
        %v1165 = vpop.f32.mrb[0].mxu0
        %v1166 = vadd.f32 0.0, %v1165
        %1167 = vmatprep.mubr.f32.mxu0 0.0
        %1168 = vmatmul.mubr.f32.gmra.mrb[0].mxu0 %v815
        %v1169 = vpop.f32.mrb[0].mxu0
        %v1170 = vadd.f32 0.0, %v1169
        %v1171 = vpop.f32.mrb[0].mxu0
        %v1172 = vadd.f32 0.0, %v1171
        %1173 = vmatprep.mubr.f32.mxu0 0.0
        %1174 = vmatmul.mubr.f32.gmra.mrb[0].mxu0 %v818
        %v1175 = vpop.f32.mrb[0].mxu0
        %v1176 = vadd.f32 0.0, %v1175
        %v1177 = vpop.f32.mrb[0].mxu0
        %v1178 = vadd.f32 0.0, %v1177
        %1179 = vmatprep.mubr.f32.mxu0 0.0
        %1180 = vmatmul.mubr.f32.gmra.mrb[0].mxu0 %v821
        %v1181 = vpop.f32.mrb[0].mxu0
        %v1182 = vadd.f32 0.0, %v1181
        %v1183 = vpop.f32.mrb[0].mxu0
        %v1184 = vadd.f32 0.0, %v1183
        %1185 = vmatprep.mubr.f32.mxu0 0.0
        %1186 = vmatmul.mubr.f32.gmra.mrb[0].mxu0 %v824
        %v1187 = vpop.f32.mrb[0].mxu0
        %v1188 = vadd.f32 0.0, %v1187
        %v1189 = vpop.f32.mrb[0].mxu0
        %v1190 = vadd.f32 0.0, %v1189
        %1191 = vmatprep.mubr.f32.mxu0 0.0
        %1192 = vmatmul.mubr.f32.gmra.mrb[0].mxu0 %v827
        %v1193 = vpop.f32.mrb[0].mxu0
        %v1194 = vadd.f32 0.0, %v1193
        %v1195 = vpop.f32.mrb[0].mxu0
        %v1196 = vadd.f32 0.0, %v1195
        %1197 = vmatprep.mubr.f32.mxu0 0.0
        %1198 = vmatmul.mubr.f32.gmra.mrb[0].mxu0 %v830
        %v1199 = vpop.f32.mrb[0].mxu0
        %v1200 = vadd.f32 0.0, %v1199
        %v1201 = vpop.f32.mrb[0].mxu0
        %v1202 = vadd.f32 0.0, %v1201
        %1203 = vmatprep.mubr.f32.mxu0 0.0
        %1204 = vmatmul.mubr.f32.gmra.mrb[0].mxu0 %v833
        %v1205 = vpop.f32.mrb[0].mxu0
        %v1206 = vadd.f32 0.0, %v1205
        %v1207 = vpop.f32.mrb[0].mxu0
        %v1208 = vadd.f32 0.0, %v1207
        %1209 = vmatprep.mubr.f32.mxu0 0.0
        %1210 = vmatmul.mubr.f32.gmra.mrb[0].mxu0 %v836
        %v1211 = vpop.f32.mrb[0].mxu0
        %v1212 = vadd.f32 0.0, %v1211
        %v1213 = vpop.f32.mrb[0].mxu0
        %v1214 = vadd.f32 0.0, %v1213
        %1215 = vmatprep.mubr.f32.mxu0 0.0
        %1216 = vmatmul.mubr.f32.gmra.mrb[0].mxu0 %v839
        %v1217 = vpop.f32.mrb[0].mxu0
        %v1218 = vadd.f32 0.0, %v1217
        %v1219 = vpop.f32.mrb[0].mxu0
        %v1220 = vadd.f32 0.0, %v1219
        %1221 = vmatprep.mubr.f32.mxu0 0.0
        %1222 = vmatmul.mubr.f32.gmra.mrb[0].mxu0 %v842
        %v1223 = vpop.f32.mrb[0].mxu0
        %v1224 = vadd.f32 0.0, %v1223
        %v1225 = vpop.f32.mrb[0].mxu0
        %v1226 = vadd.f32 0.0, %v1225
        %1227 = vmatprep.mubr.f32.mxu0 0.0
        %1228 = vmatmul.mubr.f32.gmra.mrb[0].mxu0 %v845
        %v1229 = vpop.f32.mrb[0].mxu0
        %v1230 = vadd.f32 0.0, %v1229
        %v1231 = vpop.f32.mrb[0].mxu0
        %v1232 = vadd.f32 0.0, %v1231
        %1233 = vmatprep.mubr.f32.mxu0 0.0
        %1234 = vmatmul.mubr.f32.gmra.mrb[0].mxu0 %v848
        %v1235 = vpop.f32.mrb[0].mxu0
        %v1236 = vadd.f32 0.0, %v1235
        %v1237 = vpop.f32.mrb[0].mxu0
        %v1238 = vadd.f32 0.0, %v1237
        %1239 = vmatprep.mubr.f32.mxu0 0.0
        %1240 = vmatmul.mubr.f32.gmra.mrb[0].mxu0 %v851
        %v1241 = vpop.f32.mrb[0].mxu0
        %v1242 = vadd.f32 0.0, %v1241
        %v1243 = vpop.f32.mrb[0].mxu0
        %v1244 = vadd.f32 0.0, %v1243
        %1245 = vmatprep.mubr.f32.mxu0 0.0
        %1246 = vmatmul.mubr.f32.gmra.mrb[0].mxu0 %v854
        %v1247 = vpop.f32.mrb[0].mxu0
        %v1248 = vadd.f32 0.0, %v1247
        %v1249 = vpop.f32.mrb[0].mxu0
        %v1250 = vadd.f32 0.0, %v1249
        %1251 = vmatprep.mubr.f32.mxu0 0.0
        %1252 = vmatmul.mubr.f32.gmra.mrb[0].mxu0 %v857
        %v1253 = vpop.f32.mrb[0].mxu0
        %v1254 = vadd.f32 0.0, %v1253
        %v1255 = vpop.f32.mrb[0].mxu0
        %v1256 = vadd.f32 0.0, %v1255
        %1257 = vmatprep.mubr.f32.mxu0 0.0
        %1258 = vmatmul.mubr.f32.gmra.mrb[0].mxu0 %v860
        %v1259 = vpop.f32.mrb[0].mxu0
        %v1260 = vadd.f32 0.0, %v1259
        %v1261 = vpop.f32.mrb[0].mxu0
        %v1262 = vadd.f32 0.0, %v1261
        %1263 = vmatprep.mubr.f32.mxu0 0.0
        %1264 = vmatmul.mubr.f32.gmra.mrb[0].mxu0 %v863
        %v1265 = vpop.f32.mrb[0].mxu0
        %v1266 = vadd.f32 0.0, %v1265
        %v1267 = vpop.f32.mrb[0].mxu0
        %v1268 = vadd.f32 0.0, %v1267
        %1269 = vmatprep.mubr.f32.mxu0 0.0
        %1270 = vmatmul.mubr.f32.gmra.mrb[0].mxu0 %v866
        %v1271 = vpop.f32.mrb[0].mxu0
        %v1272 = vadd.f32 0.0, %v1271
        %v1273 = vpop.f32.mrb[0].mxu0
        %v1274 = vadd.f32 0.0, %v1273
        %1275 = vmatprep.mubr.f32.mxu0 0.0
        %1276 = vmatmul.mubr.f32.gmra.mrb[0].mxu0 %v869
        %v1277 = vpop.f32.mrb[0].mxu0
        %v1278 = vadd.f32 0.0, %v1277
        %v1279 = vpop.f32.mrb[0].mxu0
        %v1280 = vadd.f32 0.0, %v1279
        %1281 = vmatprep.mubr.f32.mxu0 0.0
        %1282 = vmatmul.mubr.f32.gmra.mrb[0].mxu0 %v872
        %v1283 = vpop.f32.mrb[0].mxu0
        %v1284 = vadd.f32 0.0, %v1283
        %v1285 = vpop.f32.mrb[0].mxu0
        %v1286 = vadd.f32 0.0, %v1285
        %1287 = vmatprep.mubr.f32.mxu0 0.0
        %1288 = vmatmul.mubr.f32.gmra.mrb[0].mxu0 %v875
        %v1289 = vpop.f32.mrb[0].mxu0
        %v1290 = vadd.f32 0.0, %v1289
        %v1291 = vpop.f32.mrb[0].mxu0
        %v1292 = vadd.f32 0.0, %v1291
        %1293 = vmatprep.mubr.f32.mxu0 0.0
        %1294 = vmatmul.mubr.f32.gmra.mrb[0].mxu0 %v878
        %v1295 = vpop.f32.mrb[0].mxu0
        %v1296 = vadd.f32 0.0, %v1295
        %v1297 = vpop.f32.mrb[0].mxu0
        %v1298 = vadd.f32 0.0, %v1297
        %1299 = vmatprep.mubr.f32.mxu0 0.0
        %1300 = vmatmul.mubr.f32.gmra.mrb[0].mxu0 %v881
        %v1301 = vpop.f32.mrb[0].mxu0
        %v1302 = vadd.f32 0.0, %v1301
        %v1303 = vpop.f32.mrb[0].mxu0
        %v1304 = vadd.f32 0.0, %v1303
        %1305 = vmatprep.mubr.f32.mxu0 0.0
        %1306 = vmatmul.mubr.f32.gmra.mrb[0].mxu0 %v884
        %v1307 = vpop.f32.mrb[0].mxu0
        %v1308 = vadd.f32 0.0, %v1307
        %v1309 = vpop.f32.mrb[0].mxu0
        %v1310 = vadd.f32 0.0, %v1309
        %1311 = vmatprep.mubr.f32.mxu0 0.0
        %1312 = vmatmul.mubr.f32.gmra.mrb[0].mxu0 %v887
        %v1313 = vpop.f32.mrb[0].mxu0
        %v1314 = vadd.f32 0.0, %v1313
        %v1315 = vpop.f32.mrb[0].mxu0
        %v1316 = vadd.f32 0.0, %v1315
        %1317 = vmatprep.mubr.f32.mxu0 0.0
        %1318 = vmatmul.mubr.f32.gmra.mrb[0].mxu0 %v890
        %v1319 = vpop.f32.mrb[0].mxu0
        %v1320 = vadd.f32 0.0, %v1319
        %v1321 = vpop.f32.mrb[0].mxu0
        %v1322 = vadd.f32 0.0, %v1321
        %1323 = vmatprep.mubr.f32.mxu0 0.0
        %1324 = vmatmul.mubr.f32.gmra.mrb[0].mxu0 %v893
        %v1325 = vpop.f32.mrb[0].mxu0
        %v1326 = vadd.f32 0.0, %v1325
        %v1327 = vpop.f32.mrb[0].mxu0
        %v1328 = vadd.f32 0.0, %v1327
        %1329 = vmatprep.mubr.f32.mxu0 0.0
        %1330 = vmatmul.mubr.f32.gmra.mrb[0].mxu0 %v896
        %v1331 = vpop.f32.mrb[0].mxu0
        %v1332 = vadd.f32 0.0, %v1331
        %v1333 = vpop.f32.mrb[0].mxu0
        %v1334 = vadd.f32 0.0, %v1333
        %1335 = vmatprep.mubr.f32.mxu0 0.0
        %1336 = vmatmul.mubr.f32.gmra.mrb[0].mxu0 %v899
        %v1337 = vpop.f32.mrb[0].mxu0
        %v1338 = vadd.f32 0.0, %v1337
        %v1339 = vpop.f32.mrb[0].mxu0
        %v1340 = vadd.f32 0.0, %v1339
        %1341 = vmatprep.mubr.f32.mxu0 0.0
        %1342 = vmatmul.mubr.f32.gmra.mrb[0].mxu0 %v902
        %v1343 = vpop.f32.mrb[0].mxu0
        %v1344 = vadd.f32 0.0, %v1343
        %v1345 = vpop.f32.mrb[0].mxu0
        %v1346 = vadd.f32 0.0, %v1345
        %1347 = vmatprep.mubr.f32.mxu0 0.0
        %1348 = vmatmul.mubr.f32.gmra.mrb[0].mxu0 %v905
        %v1349 = vpop.f32.mrb[0].mxu0
        %v1350 = vadd.f32 0.0, %v1349
        %v1351 = vpop.f32.mrb[0].mxu0
        %v1352 = vadd.f32 0.0, %v1351
        %1353 = vmatprep.mubr.f32.mxu0 0.0
        %1354 = vmatmul.mubr.f32.gmra.mrb[0].mxu0 %v908
        %v1355 = vpop.f32.mrb[0].mxu0
        %v1356 = vadd.f32 0.0, %v1355
        %v1357 = vpop.f32.mrb[0].mxu0
        %v1358 = vadd.f32 0.0, %v1357
        %1359 = vmatprep.mubr.f32.mxu0 0.0
        %1360 = vmatmul.mubr.f32.gmra.mrb[0].mxu0 %v911
        %v1361 = vpop.f32.mrb[0].mxu0
        %v1362 = vadd.f32 0.0, %v1361
        %v1363 = vpop.f32.mrb[0].mxu0
        %v1364 = vadd.f32 0.0, %v1363
        %1365 = vdwg.mxu0
        %v1366 = vmax.f32 %v984, %v996
        %v1367 = vmax.f32 %v990, %v1002
        %v1368 = vmax.f32 %v1366, %v1008
        %v1369 = vmax.f32 %v1367, %v1014
        %v1370 = vmax.f32 %v1368, %v1020
        %v1371 = vmax.f32 %v1369, %v1026
        %v1372 = vmax.f32 %v1370, %v1032
        %v1373 = vmax.f32 %v1371, %v1038
        %v1374 = vmax.f32 %v1372, %v1044
        %v1375 = vmax.f32 %v1373, %v1050
        %v1376 = vmax.f32 %v1374, %v1056
        %v1377 = vmax.f32 %v1375, %v1062
        %v1378 = vmax.f32 %v1376, %v1068
        %v1379 = vmax.f32 %v1377, %v1074
        %v1380 = vmax.f32 %v1378, %v1080
        %v1381 = vmax.f32 %v1379, %v1086
        %v1382 = vmax.f32 %v1380, %v1092
        %v1383 = vmax.f32 %v1381, %v1098
        %v1384 = vmax.f32 %v1382, %v1104
        %v1385 = vmax.f32 %v1383, %v1110
        %v1386 = vmax.f32 %v1384, %v1116
        %v1387 = vmax.f32 %v1385, %v1122
        %v1388 = vmax.f32 %v1386, %v1128
        %v1389 = vmax.f32 %v1387, %v1134
        %v1390 = vmax.f32 %v1388, %v1140
        %v1391 = vmax.f32 %v1389, %v1146
        %v1392 = vmax.f32 %v1390, %v1152
        %v1393 = vmax.f32 %v1391, %v1158
        %v1394 = vmax.f32 %v1392, %v1164
        %v1395 = vmax.f32 %v1393, %v1170
        %v1396 = vmax.f32 %v1394, %v1176
        %v1397 = vmax.f32 %v1395, %v1182
        %v1398 = vmax.f32 %v1396, %v1188
        %v1399 = vmax.f32 %v1397, %v1194
        %v1400 = vmax.f32 %v1398, %v1200
        %v1401 = vmax.f32 %v1399, %v1206
        %v1402 = vmax.f32 %v1400, %v1212
        %v1403 = vmax.f32 %v1401, %v1218
        %v1404 = vmax.f32 %v1402, %v1224
        %v1405 = vmax.f32 %v1403, %v1230
        %v1406 = vmax.f32 %v1404, %v1236
        %v1407 = vmax.f32 %v1405, %v1242
        %v1408 = vmax.f32 %v1406, %v1248
        %v1409 = vmax.f32 %v1407, %v1254
        %v1410 = vmax.f32 %v1408, %v1260
        %v1411 = vmax.f32 %v1409, %v1266
        %v1412 = vmax.f32 %v1410, %v1272
        %v1413 = vmax.f32 %v1411, %v1278
        %v1414 = vmax.f32 %v1412, %v1284
        %v1415 = vmax.f32 %v1413, %v1290
        %v1416 = vmax.f32 %v1414, %v1296
        %v1417 = vmax.f32 %v1415, %v1302
        %v1418 = vmax.f32 %v1416, %v1308
        %v1419 = vmax.f32 %v1417, %v1314
        %v1420 = vmax.f32 %v1418, %v1320
        %v1421 = vmax.f32 %v1419, %v1326
        %v1422 = vmax.f32 %v1420, %v1332
        %v1423 = vmax.f32 %v1421, %v1338
        %v1424 = vmax.f32 %v1422, %v1344
        %v1425 = vmax.f32 %v1423, %v1350
        %v1426 = vmax.f32 %v1424, %v1356
        %v1427 = vmax.f32 %v1425, %v1362
        %v1428 = vmax.f32 %v1426, %v1427
        %v1429 = vrot.slane %v1428, 4
        %v1430 = vmax.f32 %v1428, %v1429
        %v1431 = vrot.slane %v1430, 2
        %v1432 = vmax.f32 %v1430, %v1431
        %v1433 = vrot.slane %v1432, 1
        %v1434 = vmax.f32 %v1432, %v1433
        %v1435 = vmax.f32 %v986, %v998
        %v1436 = vmax.f32 %v992, %v1004
        %v1437 = vmax.f32 %v1435, %v1010
        %v1438 = vmax.f32 %v1436, %v1016
        %v1439 = vmax.f32 %v1437, %v1022
        %v1440 = vmax.f32 %v1438, %v1028
        %v1441 = vmax.f32 %v1439, %v1034
        %v1442 = vmax.f32 %v1440, %v1040
        %v1443 = vmax.f32 %v1441, %v1046
        %v1444 = vmax.f32 %v1442, %v1052
        %v1445 = vmax.f32 %v1443, %v1058
        %v1446 = vmax.f32 %v1444, %v1064
        %v1447 = vmax.f32 %v1445, %v1070
        %v1448 = vmax.f32 %v1446, %v1076
        %v1449 = vmax.f32 %v1447, %v1082
        %v1450 = vmax.f32 %v1448, %v1088
        %v1451 = vmax.f32 %v1449, %v1094
        %v1452 = vmax.f32 %v1450, %v1100
        %v1453 = vmax.f32 %v1451, %v1106
        %v1454 = vmax.f32 %v1452, %v1112
        %v1455 = vmax.f32 %v1453, %v1118
        %v1456 = vmax.f32 %v1454, %v1124
        %v1457 = vmax.f32 %v1455, %v1130
        %v1458 = vmax.f32 %v1456, %v1136
        %v1459 = vmax.f32 %v1457, %v1142
        %v1460 = vmax.f32 %v1458, %v1148
        %v1461 = vmax.f32 %v1459, %v1154
        %v1462 = vmax.f32 %v1460, %v1160
        %v1463 = vmax.f32 %v1461, %v1166
        %v1464 = vmax.f32 %v1462, %v1172
        %v1465 = vmax.f32 %v1463, %v1178
        %v1466 = vmax.f32 %v1464, %v1184
        %v1467 = vmax.f32 %v1465, %v1190
        %v1468 = vmax.f32 %v1466, %v1196
        %v1469 = vmax.f32 %v1467, %v1202
        %v1470 = vmax.f32 %v1468, %v1208
        %v1471 = vmax.f32 %v1469, %v1214
        %v1472 = vmax.f32 %v1470, %v1220
        %v1473 = vmax.f32 %v1471, %v1226
        %v1474 = vmax.f32 %v1472, %v1232
        %v1475 = vmax.f32 %v1473, %v1238
        %v1476 = vmax.f32 %v1474, %v1244
        %v1477 = vmax.f32 %v1475, %v1250
        %v1478 = vmax.f32 %v1476, %v1256
        %v1479 = vmax.f32 %v1477, %v1262
        %v1480 = vmax.f32 %v1478, %v1268
        %v1481 = vmax.f32 %v1479, %v1274
        %v1482 = vmax.f32 %v1480, %v1280
        %v1483 = vmax.f32 %v1481, %v1286
        %v1484 = vmax.f32 %v1482, %v1292
        %v1485 = vmax.f32 %v1483, %v1298
        %v1486 = vmax.f32 %v1484, %v1304
        %v1487 = vmax.f32 %v1485, %v1310
        %v1488 = vmax.f32 %v1486, %v1316
        %v1489 = vmax.f32 %v1487, %v1322
        %v1490 = vmax.f32 %v1488, %v1328
        %v1491 = vmax.f32 %v1489, %v1334
        %v1492 = vmax.f32 %v1490, %v1340
        %v1493 = vmax.f32 %v1491, %v1346
        %v1494 = vmax.f32 %v1492, %v1352
        %v1495 = vmax.f32 %v1493, %v1358
        %v1496 = vmax.f32 %v1494, %v1364
        %v1497 = vmax.f32 %v1495, %v1496
        %v1498 = vrot.slane %v1497, 4
        %v1499 = vmax.f32 %v1497, %v1498
        %v1500 = vrot.slane %v1499, 2
        %v1501 = vmax.f32 %v1499, %v1500
        %v1502 = vrot.slane %v1501, 1
        %v1503 = vmax.f32 %v1501, %v1502
        %v1504 = vsub.f32 %v984, %v1434
        %v1505 = vsub.f32 %v986, %v1503
        %v1506 = vsub.f32 %v990, %v1434
        %v1507 = vsub.f32 %v992, %v1503
        %v1508 = vsub.f32 %v996, %v1434
        %v1509 = vsub.f32 %v998, %v1503
        %v1510 = vsub.f32 %v1002, %v1434
        %v1511 = vsub.f32 %v1004, %v1503
        %v1512 = vsub.f32 %v1008, %v1434
        %v1513 = vsub.f32 %v1010, %v1503
        %v1514 = vsub.f32 %v1014, %v1434
        %v1515 = vsub.f32 %v1016, %v1503
        %v1516 = vsub.f32 %v1020, %v1434
        %v1517 = vsub.f32 %v1022, %v1503
        %v1518 = vsub.f32 %v1026, %v1434
        %v1519 = vsub.f32 %v1028, %v1503
        %v1520 = vsub.f32 %v1032, %v1434
        %v1521 = vsub.f32 %v1034, %v1503
        %v1522 = vsub.f32 %v1038, %v1434
        %v1523 = vsub.f32 %v1040, %v1503
        %v1524 = vsub.f32 %v1044, %v1434
        %v1525 = vsub.f32 %v1046, %v1503
        %v1526 = vsub.f32 %v1050, %v1434
        %v1527 = vsub.f32 %v1052, %v1503
        %v1528 = vsub.f32 %v1056, %v1434
        %v1529 = vsub.f32 %v1058, %v1503
        %v1530 = vsub.f32 %v1062, %v1434
        %v1531 = vsub.f32 %v1064, %v1503
        %v1532 = vsub.f32 %v1068, %v1434
        %v1533 = vsub.f32 %v1070, %v1503
        %v1534 = vsub.f32 %v1074, %v1434
        %v1535 = vsub.f32 %v1076, %v1503
        %v1536 = vsub.f32 %v1080, %v1434
        %v1537 = vsub.f32 %v1082, %v1503
        %v1538 = vsub.f32 %v1086, %v1434
        %v1539 = vsub.f32 %v1088, %v1503
        %v1540 = vsub.f32 %v1092, %v1434
        %v1541 = vsub.f32 %v1094, %v1503
        %v1542 = vsub.f32 %v1098, %v1434
        %v1543 = vsub.f32 %v1100, %v1503
        %v1544 = vsub.f32 %v1104, %v1434
        %v1545 = vsub.f32 %v1106, %v1503
        %v1546 = vsub.f32 %v1110, %v1434
        %v1547 = vsub.f32 %v1112, %v1503
        %v1548 = vsub.f32 %v1116, %v1434
        %v1549 = vsub.f32 %v1118, %v1503
        %v1550 = vsub.f32 %v1122, %v1434
        %v1551 = vsub.f32 %v1124, %v1503
        %v1552 = vsub.f32 %v1128, %v1434
        %v1553 = vsub.f32 %v1130, %v1503
        %v1554 = vsub.f32 %v1134, %v1434
        %v1555 = vsub.f32 %v1136, %v1503
        %v1556 = vsub.f32 %v1140, %v1434
        %v1557 = vsub.f32 %v1142, %v1503
        %v1558 = vsub.f32 %v1146, %v1434
        %v1559 = vsub.f32 %v1148, %v1503
        %v1560 = vsub.f32 %v1152, %v1434
        %v1561 = vsub.f32 %v1154, %v1503
        %v1562 = vsub.f32 %v1158, %v1434
        %v1563 = vsub.f32 %v1160, %v1503
        %v1564 = vsub.f32 %v1164, %v1434
        %v1565 = vsub.f32 %v1166, %v1503
        %v1566 = vsub.f32 %v1170, %v1434
        %v1567 = vsub.f32 %v1172, %v1503
        %v1568 = vsub.f32 %v1176, %v1434
        %v1569 = vsub.f32 %v1178, %v1503
        %v1570 = vsub.f32 %v1182, %v1434
        %v1571 = vsub.f32 %v1184, %v1503
        %v1572 = vsub.f32 %v1188, %v1434
        %v1573 = vsub.f32 %v1190, %v1503
        %v1574 = vsub.f32 %v1194, %v1434
        %v1575 = vsub.f32 %v1196, %v1503
        %v1576 = vsub.f32 %v1200, %v1434
        %v1577 = vsub.f32 %v1202, %v1503
        %v1578 = vsub.f32 %v1206, %v1434
        %v1579 = vsub.f32 %v1208, %v1503
        %v1580 = vsub.f32 %v1212, %v1434
        %v1581 = vsub.f32 %v1214, %v1503
        %v1582 = vsub.f32 %v1218, %v1434
        %v1583 = vsub.f32 %v1220, %v1503
        %v1584 = vsub.f32 %v1224, %v1434
        %v1585 = vsub.f32 %v1226, %v1503
        %v1586 = vsub.f32 %v1230, %v1434
        %v1587 = vsub.f32 %v1232, %v1503
        %v1588 = vsub.f32 %v1236, %v1434
        %v1589 = vsub.f32 %v1238, %v1503
        %v1590 = vsub.f32 %v1242, %v1434
        %v1591 = vsub.f32 %v1244, %v1503
        %v1592 = vsub.f32 %v1248, %v1434
        %v1593 = vsub.f32 %v1250, %v1503
        %v1594 = vsub.f32 %v1254, %v1434
        %v1595 = vsub.f32 %v1256, %v1503
        %v1596 = vsub.f32 %v1260, %v1434
        %v1597 = vsub.f32 %v1262, %v1503
        %v1598 = vsub.f32 %v1266, %v1434
        %v1599 = vsub.f32 %v1268, %v1503
        %v1600 = vsub.f32 %v1272, %v1434
        %v1601 = vsub.f32 %v1274, %v1503
        %v1602 = vsub.f32 %v1278, %v1434
        %v1603 = vsub.f32 %v1280, %v1503
        %v1604 = vsub.f32 %v1284, %v1434
        %v1605 = vsub.f32 %v1286, %v1503
        %v1606 = vsub.f32 %v1290, %v1434
        %v1607 = vsub.f32 %v1292, %v1503
        %v1608 = vsub.f32 %v1296, %v1434
        %v1609 = vsub.f32 %v1298, %v1503
        %v1610 = vsub.f32 %v1302, %v1434
        %v1611 = vsub.f32 %v1304, %v1503
        %v1612 = vsub.f32 %v1308, %v1434
        %v1613 = vsub.f32 %v1310, %v1503
        %v1614 = vsub.f32 %v1314, %v1434
        %v1615 = vsub.f32 %v1316, %v1503
        %v1616 = vsub.f32 %v1320, %v1434
        %v1617 = vsub.f32 %v1322, %v1503
        %v1618 = vsub.f32 %v1326, %v1434
        %v1619 = vsub.f32 %v1328, %v1503
        %v1620 = vsub.f32 %v1332, %v1434
        %v1621 = vsub.f32 %v1334, %v1503
        %v1622 = vsub.f32 %v1338, %v1434
        %v1623 = vsub.f32 %v1340, %v1503
        %v1624 = vsub.f32 %v1344, %v1434
        %v1625 = vsub.f32 %v1346, %v1503
        %v1626 = vsub.f32 %v1350, %v1434
        %v1627 = vsub.f32 %v1352, %v1503
        %v1628 = vsub.f32 %v1356, %v1434
        %v1629 = vsub.f32 %v1358, %v1503
        %v1630 = vsub.f32 %v1362, %v1434
        %v1631 = vsub.f32 %v1364, %v1503
        %v1632 = vmul.f32 %v1504, 1.442695
        %v1633 = vpow.pop %v1632
        %v1634 = vmul.f32 %v1505, 1.442695
        %v1635 = vpow.pop %v1634
        %v1636 = vmul.f32 %v1506, 1.442695
        %v1637 = vpow.pop %v1636
        %v1638 = vmul.f32 %v1507, 1.442695
        %v1639 = vpow.pop %v1638
        %v1640 = vmul.f32 %v1508, 1.442695
        %v1641 = vpow.pop %v1640
        %v1642 = vmul.f32 %v1509, 1.442695
        %v1643 = vpow.pop %v1642
        %v1644 = vmul.f32 %v1510, 1.442695
        %v1645 = vpow.pop %v1644
        %v1646 = vmul.f32 %v1511, 1.442695
        %v1647 = vpow.pop %v1646
        %v1648 = vmul.f32 %v1512, 1.442695
        %v1649 = vpow.pop %v1648
        %v1650 = vmul.f32 %v1513, 1.442695
        %v1651 = vpow.pop %v1650
        %v1652 = vmul.f32 %v1514, 1.442695
        %v1653 = vpow.pop %v1652
        %v1654 = vmul.f32 %v1515, 1.442695
        %v1655 = vpow.pop %v1654
        %v1656 = vmul.f32 %v1516, 1.442695
        %v1657 = vpow.pop %v1656
        %v1658 = vmul.f32 %v1517, 1.442695
        %v1659 = vpow.pop %v1658
        %v1660 = vmul.f32 %v1518, 1.442695
        %v1661 = vpow.pop %v1660
        %v1662 = vmul.f32 %v1519, 1.442695
        %v1663 = vpow.pop %v1662
        %v1664 = vmul.f32 %v1520, 1.442695
        %v1665 = vpow.pop %v1664
        %v1666 = vmul.f32 %v1521, 1.442695
        %v1667 = vpow.pop %v1666
        %v1668 = vmul.f32 %v1522, 1.442695
        %v1669 = vpow.pop %v1668
        %v1670 = vmul.f32 %v1523, 1.442695
        %v1671 = vpow.pop %v1670
        %v1672 = vmul.f32 %v1524, 1.442695
        %v1673 = vpow.pop %v1672
        %v1674 = vmul.f32 %v1525, 1.442695
        %v1675 = vpow.pop %v1674
        %v1676 = vmul.f32 %v1526, 1.442695
        %v1677 = vpow.pop %v1676
        %v1678 = vmul.f32 %v1527, 1.442695
        %v1679 = vpow.pop %v1678
        %v1680 = vmul.f32 %v1528, 1.442695
        %v1681 = vpow.pop %v1680
        %v1682 = vmul.f32 %v1529, 1.442695
        %v1683 = vpow.pop %v1682
        %v1684 = vmul.f32 %v1530, 1.442695
        %v1685 = vpow.pop %v1684
        %v1686 = vmul.f32 %v1531, 1.442695
        %v1687 = vpow.pop %v1686
        %v1688 = vmul.f32 %v1532, 1.442695
        %v1689 = vpow.pop %v1688
        %v1690 = vmul.f32 %v1533, 1.442695
        %v1691 = vpow.pop %v1690
        %v1692 = vmul.f32 %v1534, 1.442695
        %v1693 = vpow.pop %v1692
        %v1694 = vmul.f32 %v1535, 1.442695
        %v1695 = vpow.pop %v1694
        %v1696 = vmul.f32 %v1536, 1.442695
        %v1697 = vpow.pop %v1696
        %v1698 = vmul.f32 %v1537, 1.442695
        %v1699 = vpow.pop %v1698
        %v1700 = vmul.f32 %v1538, 1.442695
        %v1701 = vpow.pop %v1700
        %v1702 = vmul.f32 %v1539, 1.442695
        %v1703 = vpow.pop %v1702
        %v1704 = vmul.f32 %v1540, 1.442695
        %v1705 = vpow.pop %v1704
        %v1706 = vmul.f32 %v1541, 1.442695
        %v1707 = vpow.pop %v1706
        %v1708 = vmul.f32 %v1542, 1.442695
        %v1709 = vpow.pop %v1708
        %v1710 = vmul.f32 %v1543, 1.442695
        %v1711 = vpow.pop %v1710
        %v1712 = vmul.f32 %v1544, 1.442695
        %v1713 = vpow.pop %v1712
        %v1714 = vmul.f32 %v1545, 1.442695
        %v1715 = vpow.pop %v1714
        %v1716 = vmul.f32 %v1546, 1.442695
        %v1717 = vpow.pop %v1716
        %v1718 = vmul.f32 %v1547, 1.442695
        %v1719 = vpow.pop %v1718
        %v1720 = vmul.f32 %v1548, 1.442695
        %v1721 = vpow.pop %v1720
        %v1722 = vmul.f32 %v1549, 1.442695
        %v1723 = vpow.pop %v1722
        %v1724 = vmul.f32 %v1550, 1.442695
        %v1725 = vpow.pop %v1724
        %v1726 = vmul.f32 %v1551, 1.442695
        %v1727 = vpow.pop %v1726
        %v1728 = vmul.f32 %v1552, 1.442695
        %v1729 = vpow.pop %v1728
        %v1730 = vmul.f32 %v1553, 1.442695
        %v1731 = vpow.pop %v1730
        %v1732 = vmul.f32 %v1554, 1.442695
        %v1733 = vpow.pop %v1732
        %v1734 = vmul.f32 %v1555, 1.442695
        %v1735 = vpow.pop %v1734
        %v1736 = vmul.f32 %v1556, 1.442695
        %v1737 = vpow.pop %v1736
        %v1738 = vmul.f32 %v1557, 1.442695
        %v1739 = vpow.pop %v1738
        %v1740 = vmul.f32 %v1558, 1.442695
        %v1741 = vpow.pop %v1740
        %v1742 = vmul.f32 %v1559, 1.442695
        %v1743 = vpow.pop %v1742
        %v1744 = vmul.f32 %v1560, 1.442695
        %v1745 = vpow.pop %v1744
        %v1746 = vmul.f32 %v1561, 1.442695
        %v1747 = vpow.pop %v1746
        %v1748 = vmul.f32 %v1562, 1.442695
        %v1749 = vpow.pop %v1748
        %v1750 = vmul.f32 %v1563, 1.442695
        %v1751 = vpow.pop %v1750
        %v1752 = vmul.f32 %v1564, 1.442695
        %v1753 = vpow.pop %v1752
        %v1754 = vmul.f32 %v1565, 1.442695
        %v1755 = vpow.pop %v1754
        %v1756 = vmul.f32 %v1566, 1.442695
        %v1757 = vpow.pop %v1756
        %v1758 = vmul.f32 %v1567, 1.442695
        %v1759 = vpow.pop %v1758
        %v1760 = vmul.f32 %v1568, 1.442695
        %v1761 = vpow.pop %v1760
        %v1762 = vmul.f32 %v1569, 1.442695
        %v1763 = vpow.pop %v1762
        %v1764 = vmul.f32 %v1570, 1.442695
        %v1765 = vpow.pop %v1764
        %v1766 = vmul.f32 %v1571, 1.442695
        %v1767 = vpow.pop %v1766
        %v1768 = vmul.f32 %v1572, 1.442695
        %v1769 = vpow.pop %v1768
        %v1770 = vmul.f32 %v1573, 1.442695
        %v1771 = vpow.pop %v1770
        %v1772 = vmul.f32 %v1574, 1.442695
        %v1773 = vpow.pop %v1772
        %v1774 = vmul.f32 %v1575, 1.442695
        %v1775 = vpow.pop %v1774
        %v1776 = vmul.f32 %v1576, 1.442695
        %v1777 = vpow.pop %v1776
        %v1778 = vmul.f32 %v1577, 1.442695
        %v1779 = vpow.pop %v1778
        %v1780 = vmul.f32 %v1578, 1.442695
        %v1781 = vpow.pop %v1780
        %v1782 = vmul.f32 %v1579, 1.442695
        %v1783 = vpow.pop %v1782
        %v1784 = vmul.f32 %v1580, 1.442695
        %v1785 = vpow.pop %v1784
        %v1786 = vmul.f32 %v1581, 1.442695
        %v1787 = vpow.pop %v1786
        %v1788 = vmul.f32 %v1582, 1.442695
        %v1789 = vpow.pop %v1788
        %v1790 = vmul.f32 %v1583, 1.442695
        %v1791 = vpow.pop %v1790
        %v1792 = vmul.f32 %v1584, 1.442695
        %v1793 = vpow.pop %v1792
        %v1794 = vmul.f32 %v1585, 1.442695
        %v1795 = vpow.pop %v1794
        %v1796 = vmul.f32 %v1586, 1.442695
        %v1797 = vpow.pop %v1796
        %v1798 = vmul.f32 %v1587, 1.442695
        %v1799 = vpow.pop %v1798
        %v1800 = vmul.f32 %v1588, 1.442695
        %v1801 = vpow.pop %v1800
        %v1802 = vmul.f32 %v1589, 1.442695
        %v1803 = vpow.pop %v1802
        %v1804 = vmul.f32 %v1590, 1.442695
        %v1805 = vpow.pop %v1804
        %v1806 = vmul.f32 %v1591, 1.442695
        %v1807 = vpow.pop %v1806
        %v1808 = vmul.f32 %v1592, 1.442695
        %v1809 = vpow.pop %v1808
        %v1810 = vmul.f32 %v1593, 1.442695
        %v1811 = vpow.pop %v1810
        %v1812 = vmul.f32 %v1594, 1.442695
        %v1813 = vpow.pop %v1812
        %v1814 = vmul.f32 %v1595, 1.442695
        %v1815 = vpow.pop %v1814
        %v1816 = vmul.f32 %v1596, 1.442695
        %v1817 = vpow.pop %v1816
        %v1818 = vmul.f32 %v1597, 1.442695
        %v1819 = vpow.pop %v1818
        %v1820 = vmul.f32 %v1598, 1.442695
        %v1821 = vpow.pop %v1820
        %v1822 = vmul.f32 %v1599, 1.442695
        %v1823 = vpow.pop %v1822
        %v1824 = vmul.f32 %v1600, 1.442695
        %v1825 = vpow.pop %v1824
        %v1826 = vmul.f32 %v1601, 1.442695
        %v1827 = vpow.pop %v1826
        %v1828 = vmul.f32 %v1602, 1.442695
        %v1829 = vpow.pop %v1828
        %v1830 = vmul.f32 %v1603, 1.442695
        %v1831 = vpow.pop %v1830
        %v1832 = vmul.f32 %v1604, 1.442695
        %v1833 = vpow.pop %v1832
        %v1834 = vmul.f32 %v1605, 1.442695
        %v1835 = vpow.pop %v1834
        %v1836 = vmul.f32 %v1606, 1.442695
        %v1837 = vpow.pop %v1836
        %v1838 = vmul.f32 %v1607, 1.442695
        %v1839 = vpow.pop %v1838
        %v1840 = vmul.f32 %v1608, 1.442695
        %v1841 = vpow.pop %v1840
        %v1842 = vmul.f32 %v1609, 1.442695
        %v1843 = vpow.pop %v1842
        %v1844 = vmul.f32 %v1610, 1.442695
        %v1845 = vpow.pop %v1844
        %v1846 = vmul.f32 %v1611, 1.442695
        %v1847 = vpow.pop %v1846
        %v1848 = vmul.f32 %v1612, 1.442695
        %v1849 = vpow.pop %v1848
        %v1850 = vmul.f32 %v1613, 1.442695
        %v1851 = vpow.pop %v1850
        %v1852 = vmul.f32 %v1614, 1.442695
        %v1853 = vpow.pop %v1852
        %v1854 = vmul.f32 %v1615, 1.442695
        %v1855 = vpow.pop %v1854
        %v1856 = vmul.f32 %v1616, 1.442695
        %v1857 = vpow.pop %v1856
        %v1858 = vmul.f32 %v1617, 1.442695
        %v1859 = vpow.pop %v1858
        %v1860 = vmul.f32 %v1618, 1.442695
        %v1861 = vpow.pop %v1860
        %v1862 = vmul.f32 %v1619, 1.442695
        %v1863 = vpow.pop %v1862
        %v1864 = vmul.f32 %v1620, 1.442695
        %v1865 = vpow.pop %v1864
        %v1866 = vmul.f32 %v1621, 1.442695
        %v1867 = vpow.pop %v1866
        %v1868 = vmul.f32 %v1622, 1.442695
        %v1869 = vpow.pop %v1868
        %v1870 = vmul.f32 %v1623, 1.442695
        %v1871 = vpow.pop %v1870
        %v1872 = vmul.f32 %v1624, 1.442695
        %v1873 = vpow.pop %v1872
        %v1874 = vmul.f32 %v1625, 1.442695
        %v1875 = vpow.pop %v1874
        %v1876 = vmul.f32 %v1626, 1.442695
        %v1877 = vpow.pop %v1876
        %v1878 = vmul.f32 %v1627, 1.442695
        %v1879 = vpow.pop %v1878
        %v1880 = vmul.f32 %v1628, 1.442695
        %v1881 = vpow.pop %v1880
        %v1882 = vmul.f32 %v1629, 1.442695
        %v1883 = vpow.pop %v1882
        %v1884 = vmul.f32 %v1630, 1.442695
        %v1885 = vpow.pop %v1884
        %v1886 = vmul.f32 %v1631, 1.442695
        %v1887 = vpow.pop %v1886
        %v1888 = vadd.f32 %v1633, %v1637
        %v1889 = vadd.f32 %v1888, %v1641
        %v1890 = vadd.f32 %v1889, %v1645
        %v1891 = vadd.f32 %v1890, %v1649
        %v1892 = vadd.f32 %v1891, %v1653
        %v1893 = vadd.f32 %v1892, %v1657
        %v1894 = vadd.f32 %v1893, %v1661
        %v1895 = vadd.f32 %v1894, %v1665
        %v1896 = vadd.f32 %v1895, %v1669
        %v1897 = vadd.f32 %v1896, %v1673
        %v1898 = vadd.f32 %v1897, %v1677
        %v1899 = vadd.f32 %v1898, %v1681
        %v1900 = vadd.f32 %v1899, %v1685
        %v1901 = vadd.f32 %v1900, %v1689
        %v1902 = vadd.f32 %v1901, %v1693
        %v1903 = vadd.f32 %v1902, %v1697
        %v1904 = vadd.f32 %v1903, %v1701
        %v1905 = vadd.f32 %v1904, %v1705
        %v1906 = vadd.f32 %v1905, %v1709
        %v1907 = vadd.f32 %v1906, %v1713
        %v1908 = vadd.f32 %v1907, %v1717
        %v1909 = vadd.f32 %v1908, %v1721
        %v1910 = vadd.f32 %v1909, %v1725
        %v1911 = vadd.f32 %v1910, %v1729
        %v1912 = vadd.f32 %v1911, %v1733
        %v1913 = vadd.f32 %v1912, %v1737
        %v1914 = vadd.f32 %v1913, %v1741
        %v1915 = vadd.f32 %v1914, %v1745
        %v1916 = vadd.f32 %v1915, %v1749
        %v1917 = vadd.f32 %v1916, %v1753
        %v1918 = vadd.f32 %v1917, %v1757
        %v1919 = vadd.f32 %v1918, %v1761
        %v1920 = vadd.f32 %v1919, %v1765
        %v1921 = vadd.f32 %v1920, %v1769
        %v1922 = vadd.f32 %v1921, %v1773
        %v1923 = vadd.f32 %v1922, %v1777
        %v1924 = vadd.f32 %v1923, %v1781
        %v1925 = vadd.f32 %v1924, %v1785
        %v1926 = vadd.f32 %v1925, %v1789
        %v1927 = vadd.f32 %v1926, %v1793
        %v1928 = vadd.f32 %v1927, %v1797
        %v1929 = vadd.f32 %v1928, %v1801
        %v1930 = vadd.f32 %v1929, %v1805
        %v1931 = vadd.f32 %v1930, %v1809
        %v1932 = vadd.f32 %v1931, %v1813
        %v1933 = vadd.f32 %v1932, %v1817
        %v1934 = vadd.f32 %v1933, %v1821
        %v1935 = vadd.f32 %v1934, %v1825
        %v1936 = vadd.f32 %v1935, %v1829
        %v1937 = vadd.f32 %v1936, %v1833
        %v1938 = vadd.f32 %v1937, %v1837
        %v1939 = vadd.f32 %v1938, %v1841
        %v1940 = vadd.f32 %v1939, %v1845
        %v1941 = vadd.f32 %v1940, %v1849
        %v1942 = vadd.f32 %v1941, %v1853
        %v1943 = vadd.f32 %v1942, %v1857
        %v1944 = vadd.f32 %v1943, %v1861
        %v1945 = vadd.f32 %v1944, %v1865
        %v1946 = vadd.f32 %v1945, %v1869
        %v1947 = vadd.f32 %v1946, %v1873
        %v1948 = vadd.f32 %v1947, %v1877
        %v1949 = vadd.f32 %v1948, %v1881
        %v1950 = vadd.f32 %v1949, %v1885
        %v1951 = vrot.slane %v1950, 4
        %v1952 = vadd.f32 %v1950, %v1951
        %v1953 = vrot.slane %v1952, 2
        %v1954 = vadd.f32 %v1952, %v1953
        %v1955 = vrot.slane %v1954, 1
        %v1956 = vadd.f32 %v1954, %v1955
        %v1957 = vadd.f32 %v1635, %v1639
        %v1958 = vadd.f32 %v1957, %v1643
        %v1959 = vadd.f32 %v1958, %v1647
        %v1960 = vadd.f32 %v1959, %v1651
        %v1961 = vadd.f32 %v1960, %v1655
        %v1962 = vadd.f32 %v1961, %v1659
        %v1963 = vadd.f32 %v1962, %v1663
        %v1964 = vadd.f32 %v1963, %v1667
        %v1965 = vadd.f32 %v1964, %v1671
        %v1966 = vadd.f32 %v1965, %v1675
        %v1967 = vadd.f32 %v1966, %v1679
        %v1968 = vadd.f32 %v1967, %v1683
        %v1969 = vadd.f32 %v1968, %v1687
        %v1970 = vadd.f32 %v1969, %v1691
        %v1971 = vadd.f32 %v1970, %v1695
        %v1972 = vadd.f32 %v1971, %v1699
        %v1973 = vadd.f32 %v1972, %v1703
        %v1974 = vadd.f32 %v1973, %v1707
        %v1975 = vadd.f32 %v1974, %v1711
        %v1976 = vadd.f32 %v1975, %v1715
        %v1977 = vadd.f32 %v1976, %v1719
        %v1978 = vadd.f32 %v1977, %v1723
        %v1979 = vadd.f32 %v1978, %v1727
        %v1980 = vadd.f32 %v1979, %v1731
        %v1981 = vadd.f32 %v1980, %v1735
        %v1982 = vadd.f32 %v1981, %v1739
        %v1983 = vadd.f32 %v1982, %v1743
        %v1984 = vadd.f32 %v1983, %v1747
        %v1985 = vadd.f32 %v1984, %v1751
        %v1986 = vadd.f32 %v1985, %v1755
        %v1987 = vadd.f32 %v1986, %v1759
        %v1988 = vadd.f32 %v1987, %v1763
        %v1989 = vadd.f32 %v1988, %v1767
        %v1990 = vadd.f32 %v1989, %v1771
        %v1991 = vadd.f32 %v1990, %v1775
        %v1992 = vadd.f32 %v1991, %v1779
        %v1993 = vadd.f32 %v1992, %v1783
        %v1994 = vadd.f32 %v1993, %v1787
        %v1995 = vadd.f32 %v1994, %v1791
        %v1996 = vadd.f32 %v1995, %v1795
        %v1997 = vadd.f32 %v1996, %v1799
        %v1998 = vadd.f32 %v1997, %v1803
        %v1999 = vadd.f32 %v1998, %v1807
        %v2000 = vadd.f32 %v1999, %v1811
        %v2001 = vadd.f32 %v2000, %v1815
        %v2002 = vadd.f32 %v2001, %v1819
        %v2003 = vadd.f32 %v2002, %v1823
        %v2004 = vadd.f32 %v2003, %v1827
        %v2005 = vadd.f32 %v2004, %v1831
        %v2006 = vadd.f32 %v2005, %v1835
        %v2007 = vadd.f32 %v2006, %v1839
        %v2008 = vadd.f32 %v2007, %v1843
        %v2009 = vadd.f32 %v2008, %v1847
        %v2010 = vadd.f32 %v2009, %v1851
        %v2011 = vadd.f32 %v2010, %v1855
        %v2012 = vadd.f32 %v2011, %v1859
        %v2013 = vadd.f32 %v2012, %v1863
        %v2014 = vadd.f32 %v2013, %v1867
        %v2015 = vadd.f32 %v2014, %v1871
        %v2016 = vadd.f32 %v2015, %v1875
        %v2017 = vadd.f32 %v2016, %v1879
        %v2018 = vadd.f32 %v2017, %v1883
        %v2019 = vadd.f32 %v2018, %v1887
        %v2020 = vrot.slane %v2019, 4
        %v2021 = vadd.f32 %v2019, %v2020
        %v2022 = vrot.slane %v2021, 2
        %v2023 = vadd.f32 %v2021, %v2022
        %v2024 = vrot.slane %v2023, 1
        %v2025 = vadd.f32 %v2023, %v2024
        %v2026 = vld [vmem:[#allocation3] sm:$0xff]
        %v2027 = vld [vmem:[#allocation3 + $0x8] sm:$0xff]
        %v2028 = vld [vmem:[#allocation3 + $0x10] sm:$0xff]
        %v2029 = vld [vmem:[#allocation3 + $0x18] sm:$0xff]
        %v2030 = vld [vmem:[#allocation3 + $0x20] sm:$0xff]
        %v2031 = vld [vmem:[#allocation3 + $0x28] sm:$0xff]
        %v2032 = vld [vmem:[#allocation3 + $0x30] sm:$0xff]
        %v2033 = vld [vmem:[#allocation3 + $0x38] sm:$0xff]
        %v2034 = vpack.c.bf16 %v1637, %v1633
        %v2035 = vpack.c.bf16 %v1639, %v1635
        %v2036 = vpack.c.bf16 %v1645, %v1641
        %v2037 = vpack.c.bf16 %v1647, %v1643
        %v2038 = vpack.c.bf16 %v1653, %v1649
        %v2039 = vpack.c.bf16 %v1655, %v1651
        %v2040 = vpack.c.bf16 %v1661, %v1657
        %v2041 = vpack.c.bf16 %v1663, %v1659
        %v2042 = vpack.c.bf16 %v1669, %v1665
        %v2043 = vpack.c.bf16 %v1671, %v1667
        %v2044 = vpack.c.bf16 %v1677, %v1673
        %v2045 = vpack.c.bf16 %v1679, %v1675
        %v2046 = vpack.c.bf16 %v1685, %v1681
        %v2047 = vpack.c.bf16 %v1687, %v1683
        %v2048 = vpack.c.bf16 %v1693, %v1689
        %v2049 = vpack.c.bf16 %v1695, %v1691
        %v2050 = vpack.c.bf16 %v1701, %v1697
        %v2051 = vpack.c.bf16 %v1703, %v1699
        %v2052 = vpack.c.bf16 %v1709, %v1705
        %v2053 = vpack.c.bf16 %v1711, %v1707
        %v2054 = vpack.c.bf16 %v1717, %v1713
        %v2055 = vpack.c.bf16 %v1719, %v1715
        %v2056 = vpack.c.bf16 %v1725, %v1721
        %v2057 = vpack.c.bf16 %v1727, %v1723
        %v2058 = vpack.c.bf16 %v1733, %v1729
        %v2059 = vpack.c.bf16 %v1735, %v1731
        %v2060 = vpack.c.bf16 %v1741, %v1737
        %v2061 = vpack.c.bf16 %v1743, %v1739
        %v2062 = vpack.c.bf16 %v1749, %v1745
        %v2063 = vpack.c.bf16 %v1751, %v1747
        %v2064 = vpack.c.bf16 %v1757, %v1753
        %v2065 = vpack.c.bf16 %v1759, %v1755
        %v2066 = vpack.c.bf16 %v1765, %v1761
        %v2067 = vpack.c.bf16 %v1767, %v1763
        %v2068 = vpack.c.bf16 %v1773, %v1769
        %v2069 = vpack.c.bf16 %v1775, %v1771
        %v2070 = vpack.c.bf16 %v1781, %v1777
        %v2071 = vpack.c.bf16 %v1783, %v1779
        %v2072 = vpack.c.bf16 %v1789, %v1785
        %v2073 = vpack.c.bf16 %v1791, %v1787
        %v2074 = vpack.c.bf16 %v1797, %v1793
        %v2075 = vpack.c.bf16 %v1799, %v1795
        %v2076 = vpack.c.bf16 %v1805, %v1801
        %v2077 = vpack.c.bf16 %v1807, %v1803
        %v2078 = vpack.c.bf16 %v1813, %v1809
        %v2079 = vpack.c.bf16 %v1815, %v1811
        %v2080 = vpack.c.bf16 %v1821, %v1817
        %v2081 = vpack.c.bf16 %v1823, %v1819
        %v2082 = vpack.c.bf16 %v1829, %v1825
        %v2083 = vpack.c.bf16 %v1831, %v1827
        %v2084 = vpack.c.bf16 %v1837, %v1833
        %v2085 = vpack.c.bf16 %v1839, %v1835
        %v2086 = vpack.c.bf16 %v1845, %v1841
        %v2087 = vpack.c.bf16 %v1847, %v1843
        %v2088 = vpack.c.bf16 %v1853, %v1849
        %v2089 = vpack.c.bf16 %v1855, %v1851
        %v2090 = vpack.c.bf16 %v1861, %v1857
        %v2091 = vpack.c.bf16 %v1863, %v1859
        %v2092 = vpack.c.bf16 %v1869, %v1865
        %v2093 = vpack.c.bf16 %v1871, %v1867
        %v2094 = vpack.c.bf16 %v1877, %v1873
        %v2095 = vpack.c.bf16 %v1879, %v1875
        %v2096 = vpack.c.bf16 %v1885, %v1881
        %v2097 = vpack.c.bf16 %v1887, %v1883
        %2098 = vmatprep.subr.bf16.mxu0 %v2035
        %2099 = vmatpush1.bf16.msra.mxu0 %v2034
        %2100 = vmatprep.subr.bf16.mxu0 %v2037
        %2101 = vmatpush1.bf16.msra.mxu0 %v2036
        %2102 = vmatprep.subr.bf16.mxu0 %v2039
        %2103 = vmatpush1.bf16.msra.mxu0 %v2038
        %2104 = vmatprep.subr.bf16.mxu0 %v2041
        %2105 = vmatpush1.bf16.msra.mxu0 %v2040
        %2106 = vmatprep.subr.bf16.mxu0 %v2043
        %2107 = vmatpush1.bf16.msra.mxu0 %v2042
        %2108 = vmatprep.subr.bf16.mxu0 %v2045
        %2109 = vmatpush1.bf16.msra.mxu0 %v2044
        %2110 = vmatprep.subr.bf16.mxu0 %v2047
        %2111 = vmatpush1.bf16.msra.mxu0 %v2046
        %2112 = vmatprep.subr.bf16.mxu0 %v2049
        %2113 = vmatpush1.bf16.msra.mxu0 %v2048
        %2114 = vmatprep.subr.bf16.mxu0 %v2051
        %2115 = vmatpush1.bf16.msra.mxu0 %v2050
        %2116 = vmatprep.subr.bf16.mxu0 %v2053
        %2117 = vmatpush1.bf16.msra.mxu0 %v2052
        %2118 = vmatprep.subr.bf16.mxu0 %v2055
        %2119 = vmatpush1.bf16.msra.mxu0 %v2054
        %2120 = vmatprep.subr.bf16.mxu0 %v2057
        %2121 = vmatpush1.bf16.msra.mxu0 %v2056
        %2122 = vmatprep.subr.bf16.mxu0 %v2059
        %2123 = vmatpush1.bf16.msra.mxu0 %v2058
        %2124 = vmatprep.subr.bf16.mxu0 %v2061
        %2125 = vmatpush1.bf16.msra.mxu0 %v2060
        %2126 = vmatprep.subr.bf16.mxu0 %v2063
        %2127 = vmatpush1.bf16.msra.mxu0 %v2062
        %2128 = vmatprep.subr.bf16.mxu0 %v2065
        %2129 = vmatpush1.bf16.msra.mxu0 %v2064
        %2130 = vmatprep.mubr.bf16.mxu0 %v2027
        %2131 = vmatmul.mubr.bf16.gmra.mrb[0].mxu0 %v2026
        %v2132 = vpop.f32.mrb[0].mxu0
        %v2133 = vadd.f32 0.0, %v2132
        %v2134 = vpop.f32.mrb[0].mxu0
        %v2135 = vadd.f32 0.0, %v2134
        %v2136 = vpop.f32.mrb[0].mxu0
        %v2137 = vadd.f32 0.0, %v2136
        %v2138 = vpop.f32.mrb[0].mxu0
        %v2139 = vadd.f32 0.0, %v2138
        %2140 = vmatprep.mubr.bf16.mxu0 %v2031
        %2141 = vmatmul.mubr.bf16.gmra.mrb[0].mxu0 %v2030
        %v2142 = vpop.f32.mrb[0].mxu0
        %v2143 = vadd.f32 0.0, %v2142
        %v2144 = vpop.f32.mrb[0].mxu0
        %v2145 = vadd.f32 0.0, %v2144
        %v2146 = vpop.f32.mrb[0].mxu0
        %v2147 = vadd.f32 0.0, %v2146
        %v2148 = vpop.f32.mrb[0].mxu0
        %v2149 = vadd.f32 0.0, %v2148
        %2150 = vdwg.mxu0
        %2151 = vmatprep.subr.bf16.mxu0 %v2067
        %2152 = vmatpush1.bf16.msra.mxu0 %v2066
        %2153 = vmatprep.subr.bf16.mxu0 %v2069
        %2154 = vmatpush1.bf16.msra.mxu0 %v2068
        %2155 = vmatprep.subr.bf16.mxu0 %v2071
        %2156 = vmatpush1.bf16.msra.mxu0 %v2070
        %2157 = vmatprep.subr.bf16.mxu0 %v2073
        %2158 = vmatpush1.bf16.msra.mxu0 %v2072
        %2159 = vmatprep.subr.bf16.mxu0 %v2075
        %2160 = vmatpush1.bf16.msra.mxu0 %v2074
        %2161 = vmatprep.subr.bf16.mxu0 %v2077
        %2162 = vmatpush1.bf16.msra.mxu0 %v2076
        %2163 = vmatprep.subr.bf16.mxu0 %v2079
        %2164 = vmatpush1.bf16.msra.mxu0 %v2078
        %2165 = vmatprep.subr.bf16.mxu0 %v2081
        %2166 = vmatpush1.bf16.msra.mxu0 %v2080
        %2167 = vmatprep.subr.bf16.mxu0 %v2083
        %2168 = vmatpush1.bf16.msra.mxu0 %v2082
        %2169 = vmatprep.subr.bf16.mxu0 %v2085
        %2170 = vmatpush1.bf16.msra.mxu0 %v2084
        %2171 = vmatprep.subr.bf16.mxu0 %v2087
        %2172 = vmatpush1.bf16.msra.mxu0 %v2086
        %2173 = vmatprep.subr.bf16.mxu0 %v2089
        %2174 = vmatpush1.bf16.msra.mxu0 %v2088
        %2175 = vmatprep.subr.bf16.mxu0 %v2091
        %2176 = vmatpush1.bf16.msra.mxu0 %v2090
        %2177 = vmatprep.subr.bf16.mxu0 %v2093
        %2178 = vmatpush1.bf16.msra.mxu0 %v2092
        %2179 = vmatprep.subr.bf16.mxu0 %v2095
        %2180 = vmatpush1.bf16.msra.mxu0 %v2094
        %2181 = vmatprep.subr.bf16.mxu0 %v2097
        %2182 = vmatpush1.bf16.msra.mxu0 %v2096
        %2183 = vmatprep.mubr.bf16.mxu0 %v2029
        %2184 = vmatmul.mubr.bf16.gmra.mrb[0].mxu0 %v2028
        %v2185 = vpop.f32.mrb[0].mxu0
        %v2186 = vadd.f32 %v2133, %v2185
        %v2187 = vpop.f32.mrb[0].mxu0
        %v2188 = vadd.f32 %v2135, %v2187
        %v2189 = vpop.f32.mrb[0].mxu0
        %v2190 = vadd.f32 %v2137, %v2189
        %v2191 = vpop.f32.mrb[0].mxu0
        %v2192 = vadd.f32 %v2139, %v2191
        %2193 = vmatprep.mubr.bf16.mxu0 %v2033
        %2194 = vmatmul.mubr.bf16.gmra.mrb[0].mxu0 %v2032
        %v2195 = vpop.f32.mrb[0].mxu0
        %v2196 = vadd.f32 %v2143, %v2195
        %v2197 = vpop.f32.mrb[0].mxu0
        %v2198 = vadd.f32 %v2145, %v2197
        %v2199 = vpop.f32.mrb[0].mxu0
        %v2200 = vadd.f32 %v2147, %v2199
        %v2201 = vpop.f32.mrb[0].mxu0
        %v2202 = vadd.f32 %v2149, %v2201
        %2203 = vdwg.mxu0
        %v2204 = vrcp.pop %v1956
        %v2205 = vrcp.pop %v2025
        %s2206 = smul.addr %s513, 8
        %s2207 = scalar_lea.vmem %s199, %s2206 [#allocation4]
        %v2208 = vld [vmem:[%s2207] sm:$0xff]
        %v2209 = vld [vmem:[%s2207 + $0x8] sm:$0xff]
        %v2210 = vld [vmem:[%s2207 + $0x20] sm:$0xff]
        %v2211 = vld [vmem:[%s2207 + $0x28] sm:$0xff]
        %v2212 = vld [vmem:[%s2207 + $0x40] sm:$0xff]
        %v2213 = vld [vmem:[%s2207 + $0x48] sm:$0xff]
        %v2214 = vld [vmem:[%s2207 + $0x60] sm:$0xff]
        %v2215 = vld [vmem:[%s2207 + $0x68] sm:$0xff]
        %v2216 = vmul.f32 %v2186, %v2204
        %v2217 = vmul.f32 %v2188, %v2205
        %v2218 = vmul.f32 %v2190, %v2204
        %v2219 = vmul.f32 %v2192, %v2205
        %v2220 = vmul.f32 %v2196, %v2204
        %v2221 = vmul.f32 %v2198, %v2205
        %v2222 = vmul.f32 %v2200, %v2204
        %v2223 = vmul.f32 %v2202, %v2205
        %v2224 = vadd.f32 %v2208, %v2216
        %v2225 = vadd.f32 %v2209, %v2217
        %v2226 = vadd.f32 %v2210, %v2218
        %v2227 = vadd.f32 %v2211, %v2219
        %v2228 = vadd.f32 %v2212, %v2220
        %v2229 = vadd.f32 %v2213, %v2221
        %v2230 = vadd.f32 %v2214, %v2222
        %v2231 = vadd.f32 %v2215, %v2223
        %2232 = vst [vmem:[%s229] sm:$0xff] %v2224
        %2233 = vst [vmem:[%s229 + $0x8] sm:$0xff] %v2225
        %2234 = vst [vmem:[%s229 + $0x10] sm:$0xff] %v2226
        %2235 = vst [vmem:[%s229 + $0x18] sm:$0xff] %v2227
        %2236 = vst [vmem:[%s229 + $0x20] sm:$0xff] %v2228
        %2237 = vst [vmem:[%s229 + $0x28] sm:$0xff] %v2229
        %2238 = vst [vmem:[%s229 + $0x30] sm:$0xff] %v2230
        %2239 = vst [vmem:[%s229 + $0x38] sm:$0xff] %v2231
        %s2240 = sand.u32 %s111, 1
        %s2241 = scalar_lea.sflag [#allocation6], %s2240
        %s2242 = sand.u32 %s111, 1
        %s2243 = smul.addr %s2242, 64
        %s2244 = scalar_lea.vmem [#allocation10], %s2243
        // Predicated region
        $region49: #{tpu_custom_call.1} parent=31 // pred_check
          %p2245 = pneg %p121
        $region50: #{tpu_custom_call.1} parent=31 // pred_check_branch
          %2247 = sbr.rel (%p2245) target = $region52
        $region51: #{tpu_custom_call.1} parent=31 // pred_region
          %s2248 = smul.u32 2, %s26
          %s2250 = ssub.s32 1024, 1024
          %2251 = vsyncadd %s2241, %s2250
          %s2252 = smul.addr %s25, 16
          %s2253 = sadd.s32 %s2248, %s2252
          %s2254 = smul.addr %s2253, 128
          %s2255 = scalar_lea.hbm %s3, %s2254
          %s2256 = sshll.u32 %s2244, 4
          %s2257 = int_to_ptr.vmem [resolvable:$true] %s2256
          %2262 = dma.vmem_to_hbm [thread:$0]  %s2257, 1024, %s2255, %s2241, 256, 512, 16
        $region52: #{tpu_custom_call.1} parent=31 // pred_fallthru
          _
      $region32: #{tpu_custom_call.1} parent=5 // pred_fallthru
        _
      %p2263 = scmp.le.s32.totalorder 2, %s16
      // Predicated region
      $region53: #{tpu_custom_call.1} parent=5 // pred_check
        %p2264 = pneg %p2263
      $region54: #{tpu_custom_call.1} parent=5 // pred_check_branch
        %2266 = sbr.rel (%p2264) target = $region56
      $region55: #{tpu_custom_call.1} parent=5 // pred_region
        %s2267 = ssub.s32 %s16, 2
        // Predicated region
        $region57: #{tpu_custom_call.1} parent=55 // pred_check
          %p2268 = pneg %p127
        $region58: #{tpu_custom_call.1} parent=55 // pred_check_branch
          %2270 = sbr.rel (%p2268) target = $region60
        $region59: #{tpu_custom_call.1} parent=55 // pred_region
          %s2271 = sand.u32 %s112, 1
          %s2272 = scalar_lea.sflag [#allocation6], %s2271
          %s2273 = sand.u32 %s112, 1
          %s2274 = smul.addr %s2273, 64
          %s2275 = scalar_lea.vmem [#allocation10], %s2274
          %2276 = dma.done %s2272, 1024
        $region60: #{tpu_custom_call.1} parent=55 // pred_fallthru
          _
      $region56: #{tpu_custom_call.1} parent=5 // pred_fallthru
        _
    $region6: #{tpu_custom_call.1} parent=1 // loop_footer
      %s20 = sadd.s32 1, %s16
    $region7: #{tpu_custom_call.1} parent=1 // loop_footer_branch
      %15 = sbr.rel target = $region3
    $region8: #{tpu_custom_call.1} parent=1 // loop_exit
      _
    %2277 = vsyncpa [#allocation5], 1
    %s2278 = scalar_lea.sflag [#allocation5], 1
    %2279 = vsyncpa %s2278, 1
    %2280 = vsyncpa [#allocation8], 1
    %2281 = vsyncpa [#allocation6], 1
    %s2282 = scalar_lea.sflag [#allocation6], 1
    %2283 = vsyncpa %s2282, 1

</llo_original>
